<compile_context>
chip_gen: v7x
topology: tpu7x:2x2x1
jax: 0.10.0
libtpu: 0.0.40
codegen_flags: <defaults>
</compile_context>

<pallas_src>
import functools

import jax
import jax.numpy as jnp
from jax import lax
from jax.experimental import pallas as pl
from jax.experimental.pallas import tpu as pltpu


def _ksigmoid(v):
    # Exact sigmoid via tanh: sigmoid(x) = 0.5*tanh(x/2) + 0.5 (tanh runs on the EUP).
    return 0.5 * jnp.tanh(0.5 * v) + 0.5


def _ref_sigmoid(v):
    return 1.0 / (1.0 + jnp.exp(-v))


# ----------------------------------------------------------------------------
# Pallas kernel: whole branch2 of InvertedResidual2 (stride=1) per batch element.
#   conv3x3(pad1)+BN+SiLU -> ChannelAttention -> SpatialAttention -> conv1x1+BN+SiLU
# Operates on a (Cb, H*W) channels-first / pixels-on-lanes tile.
# ----------------------------------------------------------------------------
def _branch2_kernel(H, W, Csq,
                    x_ref, w1_ref, w2_ref, cap_ref, m3_ref, wm7_ref, out_ref):
    f32 = jnp.float32
    HW = H * W
    x = x_ref[0]                                              # (Cb, HW)

    def shift(v, dy, dx):
        """Spatial shift on flattened pixels: out[., p] = v[., p + dy*W + dx] (wrapped;
        wrapped-in garbage lands exactly on positions the precomputed masks zero out)."""
        s = dy * W + dx
        return v if s == 0 else pltpu.roll(v, (-s) % HW, axis=1)

    # Packed small params: [wr | we | b1 | be | b2 | br(row-replicated)]
    cap = cap_ref[...]                                        # (Cb, 3*Csq+3)
    wr = cap[:, 0:Csq]
    we = cap[:, Csq:2 * Csq]
    b1 = cap[:, 2 * Csq:2 * Csq + 1]
    be = cap[:, 2 * Csq + 1:2 * Csq + 2]
    b2 = cap[:, 2 * Csq + 2:2 * Csq + 3]
    br = cap[0:1, 2 * Csq + 3:3 * Csq + 3]

    # ---- 3x3 conv (stride 1, pad 1, BN1 scale pre-folded): one im2col matmul ----
    cols = []
    for ky in range(3):
        for kx in range(3):
            dy, dx = ky - 1, kx - 1
            r = shift(x, dy, dx)
            if dy != 0 or dx != 0:
                r = r * m3_ref[ky * 3 + kx]                   # precomputed (Cb, HW) mask
            cols.append(r)
    colm = jnp.concatenate(cols, axis=0)                      # (9*Cb, HW)
    y = jnp.dot(w1_ref[...], colm, preferred_element_type=f32) + b1
    y = y * _ksigmoid(y)                                      # SiLU

    # ---- ChannelAttention: global mean -> 1x1 reduce (SiLU) -> 1x1 expand (sigmoid)
    m_c = jnp.sum(y, axis=1, keepdims=True) * (1.0 / HW)      # (Cb, 1)
    s1 = jnp.sum(wr * m_c, axis=0, keepdims=True) + br        # (1, Csq)
    s1 = s1 * _ksigmoid(s1)                                   # SiLU
    s2 = jnp.sum(we * s1, axis=1, keepdims=True) + be         # (Cb, 1)
    y = y * _ksigmoid(s2)

    # ---- SpatialAttention: 7x7 conv (pad 3) over [avg_c, max_c] ----
    # avg/max packed on sublanes -> 1 roll + 1 FMA per tap; 7x7 weights AND border masks
    # are pre-folded on the host into wm7[t] (2, HW).
    avgm = jnp.mean(y, axis=0, keepdims=True)                 # (1, HW)
    maxm = jnp.max(y, axis=0, keepdims=True)                  # (1, HW)
    pooled = jnp.concatenate([avgm, maxm], axis=0)            # (2, HW)
    ca2 = jnp.zeros_like(pooled)
    for t in range(49):
        dy, dx = t // 7 - 3, t % 7 - 3
        ca2 = ca2 + wm7_ref[t] * shift(pooled, dy, dx)
    ca = ca2[0:1, :] + ca2[1:2, :]                            # (1, HW)
    y = y * _ksigmoid(ca)

    # ---- 1x1 conv (BN2 scale pre-folded) + bias + SiLU; lane-dense store ----
    z = jnp.dot(w2_ref[...], y, preferred_element_type=f32) + b2
    out_ref[0] = z * _ksigmoid(z)


def branch2_pallas(x2, kp):
    """x2: (N, Cb, H, W) float32 -> (N, Cb, H, W) float32."""
    N, Cb, H, W = x2.shape
    HW = H * W
    Csq = (kp["cap"].shape[1] - 3) // 3
    x2_flat = x2.reshape(N, Cb, HW)

    # Host-side precompute (constant index_map inputs, DMA'd once):
    #  - m3:  9 zero-pad border masks for the 3x3 taps, pre-broadcast over channels.
    #  - wm7: 49 spatial-attention slabs, wm7[t, c, :] = wsa[c, t] * mask_t[:], so the
    #         kernel does neither mask construction nor per-tap scalar broadcasts.
    row = jnp.arange(HW, dtype=jnp.int32) // W
    col = jnp.arange(HW, dtype=jnp.int32) % W

    def border_mask(dy, dx):
        ok = (row + dy >= 0) & (row + dy < H) & (col + dx >= 0) & (col + dx < W)
        return ok.astype(jnp.float32)                          # (HW,)

    m3 = jnp.stack([jnp.broadcast_to(border_mask(ky - 1, kx - 1), (Cb, HW))
                    for ky in range(3) for kx in range(3)])    # (9, Cb, HW)
    wsa = kp["wsa"]                                            # (2, 49) [avg/max, ky*7+kx]
    wm7 = jnp.stack([wsa[:, t][:, None] * border_mask(t // 7 - 3, t % 7 - 3)[None, :]
                     for t in range(49)])                      # (49, 2, HW)

    kernel = functools.partial(_branch2_kernel, H, W, Csq)

    def full_spec(shape):
        nd = len(shape)
        return pl.BlockSpec(shape, lambda b, _nd=nd: (0,) * _nd)

    in_specs = [
        pl.BlockSpec((1, Cb, HW), lambda b: (b, 0, 0)),        # x2 (flattened pixels)
        full_spec((Cb, 9 * Cb)),                               # 3x3 conv weight (BN folded)
        full_spec((Cb, Cb)),                                   # 1x1 conv weight (BN folded)
        full_spec((Cb, 3 * Csq + 3)),                          # packed small params
        full_spec((9, Cb, HW)),                                # 3x3 border masks
        full_spec((49, 2, HW)),                                # 7x7 weight*mask slabs
    ]
    out_specs = pl.BlockSpec((1, Cb, HW), lambda b: (b, 0, 0))

    y_flat = pl.pallas_call(
        kernel,
        out_shape=jax.ShapeDtypeStruct((N, Cb, HW), jnp.float32),
        grid=(N,),
        in_specs=in_specs,
        out_specs=out_specs,
        compiler_params=pltpu.CompilerParams(
            dimension_semantics=("parallel",)),
    )(x2_flat, kp["w1"], kp["w2"], kp["cap"], m3, wm7)
    return y_flat.reshape(N, Cb, H, W)


# ----------------------------------------------------------------------------
# Full module forward (stride=1): split -> branch2 (Pallas) -> concat -> shuffle
# ----------------------------------------------------------------------------
def inverted_residual2_forward(x_nchw, params):
    N, C, H, W = x_nchw.shape
    Cb = C // 2
    x1 = x_nchw[:, :Cb]
    x2 = x_nchw[:, Cb:]
    y = branch2_pallas(x2, params["kernel"])
    out = jnp.concatenate([x1, y], axis=1)
    # channel_shuffle(groups=2)
    out = out.reshape(N, 2, C // 2, H, W)
    out = jnp.transpose(out, (0, 2, 1, 3, 4))
    return out.reshape(N, C, H, W)


# ----------------------------------------------------------------------------
# Deterministic parameter construction (PyTorch shapes) + kernel-layout views
# ----------------------------------------------------------------------------
def make_params(input_c, se_ratio, key):
    f32 = jnp.float32
    Cb = input_c // 2                 # branch_features
    Csq = int(Cb * se_ratio)
    eps = 1e-5
    ks = jax.random.split(key, 16)

    w1 = jax.random.normal(ks[0], (Cb, Cb, 3, 3), f32) * 0.1        # OIHW
    g1 = 1.0 + 0.1 * jax.random.normal(ks[1], (Cb,), f32)
    b1 = 0.1 * jax.random.normal(ks[2], (Cb,), f32)
    m1 = 0.1 * jax.random.normal(ks[3], (Cb,), f32)
    v1 = 1.0 + 0.1 * jnp.abs(jax.random.normal(ks[4], (Cb,), f32))
    wr = jax.random.normal(ks[5], (Csq, Cb, 1, 1), f32) * 0.2       # conv_reduce
    br = 0.1 * jax.random.normal(ks[6], (Csq,), f32)
    we = jax.random.normal(ks[7], (Cb, Csq, 1, 1), f32) * 0.2       # conv_expand
    be = 0.1 * jax.random.normal(ks[8], (Cb,), f32)
    wsa = jax.random.normal(ks[9], (1, 2, 7, 7), f32) * 0.1         # spatial attn
    w2 = jax.random.normal(ks[10], (Cb, Cb, 1, 1), f32) * 0.2       # 1x1 conv
    g2 = 1.0 + 0.1 * jax.random.normal(ks[11], (Cb,), f32)
    b2 = 0.1 * jax.random.normal(ks[12], (Cb,), f32)
    m2 = 0.1 * jax.random.normal(ks[13], (Cb,), f32)
    v2 = 1.0 + 0.1 * jnp.abs(jax.random.normal(ks[14], (Cb,), f32))

    bn1_s = g1 / jnp.sqrt(v1 + eps)
    bn1_b = b1 - m1 * bn1_s
    bn2_s = g2 / jnp.sqrt(v2 + eps)
    bn2_b = b2 - m2 * bn2_s

    ref = dict(w1=w1, bn1_s=bn1_s, bn1_b=bn1_b, wr=wr, br=br, we=we, be=be,
               wsa=wsa, w2=w2, bn2_s=bn2_s, bn2_b=bn2_b)

    # Kernel layouts: (out_ch, tap*Cb + in_ch) im2col 3x3 with BN1 scale folded; BN2 scale
    # folded into the 1x1 weight; all tiny params packed into one (Cb, 3*Csq+3) array:
    #   [wr (Cb,Csq) | we (Cb,Csq) | b1 | be | b2 | br (row-replicated, Csq cols)]
    w1_im2col = jnp.transpose(w1, (0, 2, 3, 1)).reshape(Cb, 9 * Cb)
    wr_k = wr[:, :, 0, 0].T                                   # (Cb, Csq): wr_k[c,j]=wr[j,c]
    we_k = we[:, :, 0, 0]                                     # (Cb, Csq)
    cap = jnp.concatenate([
        wr_k, we_k,
        bn1_b.reshape(Cb, 1), be.reshape(Cb, 1), bn2_b.reshape(Cb, 1),
        jnp.broadcast_to(br.reshape(1, Csq), (Cb, Csq)),
    ], axis=1)                                                # (Cb, 3*Csq+3)
    kernel = dict(
        w1=w1_im2col * bn1_s[:, None],                        # (Cb, 9*Cb), BN1 folded
        w2=w2[:, :, 0, 0] * bn2_s[:, None],                   # (Cb, Cb),   BN2 folded
        cap=cap,
        wsa=wsa[0].reshape(2, 49),                            # (2, 49): [avg/max, ky*7+kx]
    )
    return dict(ref=ref, kernel=kernel)


# ----------------------------------------------------------------------------
# Pure-JAX reference (mirrors the PyTorch forward, NCHW) for verification
# ----------------------------------------------------------------------------
def ref_forward(x, p):
    N, C, H, W = x.shape
    Cb = C // 2
    dn = ("NCHW", "OIHW", "NCHW")
    x1, x2 = x[:, :Cb], x[:, Cb:]

    y = lax.conv_general_dilated(x2, p["w1"], (1, 1), "SAME", dimension_numbers=dn)
    y = y * p["bn1_s"][None, :, None, None] + p["bn1_b"][None, :, None, None]
    y = y * _ref_sigmoid(y)

    m = jnp.mean(y, axis=(2, 3), keepdims=True)
    s = lax.conv_general_dilated(m, p["wr"], (1, 1), "VALID", dimension_numbers=dn)
    s = s + p["br"][None, :, None, None]
    s = s * _ref_sigmoid(s)
    s = lax.conv_general_dilated(s, p["we"], (1, 1), "VALID", dimension_numbers=dn)
    s = s + p["be"][None, :, None, None]
    s = _ref_sigmoid(s)
    y = y * s

    avg = jnp.mean(y, axis=1, keepdims=True)
    mx = jnp.max(y, axis=1, keepdims=True)
    pool = jnp.concatenate([avg, mx], axis=1)
    ca = lax.conv_general_dilated(pool, p["wsa"], (1, 1), "SAME", dimension_numbers=dn)
    y = y * _ref_sigmoid(ca)

    z = lax.conv_general_dilated(y, p["w2"], (1, 1), "VALID", dimension_numbers=dn)
    z = z * p["bn2_s"][None, :, None, None] + p["bn2_b"][None, :, None, None]
    z = z * _ref_sigmoid(z)

    out = jnp.concatenate([x1, z], axis=1)
    out = out.reshape(N, 2, C // 2, H, W).transpose(0, 2, 1, 3, 4).reshape(N, C, H, W)
    return out


if __name__ == "__main__":
    # stride=1 instance: input_c == output_c, branch_features = C // 2
    N, C, H, W = 2, 16, 16, 16
    se_ratio = 0.25

    key = jax.random.PRNGKey(0)
    kx, kp = jax.random.split(key)
    x = jax.random.normal(kx, (N, C, H, W), jnp.float32)
    params = make_params(C, se_ratio, kp)

    out = inverted_residual2_forward(x, params)
    out = jax.block_until_ready(out)

    ref = ref_forward(x, params["ref"])
    err = float(jnp.max(jnp.abs(out - ref)))

    assert out.shape == (N, C, H, W)
    assert bool(jnp.isfinite(out).all())
    assert err < 3e-3, f"mismatch vs reference, max abs err = {err}"
    print("KERNEL_OK")
</pallas_src>

<mosaic_0001>
module attributes {stable_mosaic.version = 11 : i64} {
  func.func @_branch2_kernel(%arg0: i32, %arg1: memref<1x8x256xf32, #tpu.memory_space<vmem>>, %arg2: memref<8x72xf32, #tpu.memory_space<vmem>>, %arg3: memref<8x8xf32, #tpu.memory_space<vmem>>, %arg4: memref<8x9xf32, #tpu.memory_space<vmem>>, %arg5: memref<9x8x256xf32, #tpu.memory_space<vmem>>, %arg6: memref<49x2x256xf32, #tpu.memory_space<vmem>>, %arg7: memref<1x8x256xf32, #tpu.memory_space<vmem>>) attributes {dimension_semantics = [#tpu.dimension_semantics<parallel>], iteration_bounds = array<i64: 2>, scalar_prefetch = 0 : i64, scratch_operands = 0 : i64, tpu.core_type = #tpu.core_type<tc>, window_params = [{transform_indices = @transform_0, window_bounds = array<i64: 1, 8, 256>}, {pipeline_mode = #tpu.pipeline_mode<synchronous>, transform_indices = @transform_1, window_bounds = array<i64: 8, 72>}, {pipeline_mode = #tpu.pipeline_mode<synchronous>, transform_indices = @transform_2, window_bounds = array<i64: 8, 8>}, {pipeline_mode = #tpu.pipeline_mode<synchronous>, transform_indices = @transform_3, window_bounds = array<i64: 8, 9>}, {pipeline_mode = #tpu.pipeline_mode<synchronous>, transform_indices = @transform_4, window_bounds = array<i64: 9, 8, 256>}, {pipeline_mode = #tpu.pipeline_mode<synchronous>, transform_indices = @transform_5, window_bounds = array<i64: 49, 2, 256>}, {transform_indices = @transform_6, window_bounds = array<i64: 1, 8, 256>}]} {
    %c0 = arith.constant 0 : index
    %c0_0 = arith.constant 0 : index
    %c0_1 = arith.constant 0 : index
    %0 = vector.load %arg1[%c0, %c0_0, %c0_1] : memref<1x8x256xf32, #tpu.memory_space<vmem>>, vector<1x8x256xf32>
    %1 = vector.shape_cast %0 : vector<1x8x256xf32> to vector<8x256xf32>
    %c0_2 = arith.constant 0 : index
    %c0_3 = arith.constant 0 : index
    %2 = vector.load %arg4[%c0_2, %c0_3] : memref<8x9xf32, #tpu.memory_space<vmem>>, vector<8x9xf32>
    %3 = vector.extract_strided_slice %2 {offsets = [0, 0], sizes = [8, 2], strides = [1, 1]} : vector<8x9xf32> to vector<8x2xf32>
    %4 = vector.extract_strided_slice %2 {offsets = [0, 2], sizes = [8, 2], strides = [1, 1]} : vector<8x9xf32> to vector<8x2xf32>
    %5 = vector.extract_strided_slice %2 {offsets = [0, 4], sizes = [8, 1], strides = [1, 1]} : vector<8x9xf32> to vector<8x1xf32>
    %6 = vector.extract_strided_slice %2 {offsets = [0, 5], sizes = [8, 1], strides = [1, 1]} : vector<8x9xf32> to vector<8x1xf32>
    %7 = vector.extract_strided_slice %2 {offsets = [0, 6], sizes = [8, 1], strides = [1, 1]} : vector<8x9xf32> to vector<8x1xf32>
    %8 = vector.extract_strided_slice %2 {offsets = [0, 7], sizes = [1, 2], strides = [1, 1]} : vector<8x9xf32> to vector<1x2xf32>
    %c17_i32 = arith.constant 17 : i32
    %9 = tpu.dynamic_rotate %1 by %c17_i32 dim 1 : vector<8x256xf32>, i32 -> vector<8x256xf32>
    %c0_4 = arith.constant 0 : index
    %c0_5 = arith.constant 0 : index
    %c0_6 = arith.constant 0 : index
    %10 = vector.load %arg5[%c0_4, %c0_5, %c0_6] : memref<9x8x256xf32, #tpu.memory_space<vmem>>, vector<1x8x256xf32>
    %11 = vector.shape_cast %10 : vector<1x8x256xf32> to vector<8x256xf32>
    %12 = arith.mulf %9, %11 : vector<8x256xf32>
    %c16_i32 = arith.constant 16 : i32
    %13 = tpu.dynamic_rotate %1 by %c16_i32 dim 1 : vector<8x256xf32>, i32 -> vector<8x256xf32>
    %c1 = arith.constant 1 : index
    %c0_7 = arith.constant 0 : index
    %c0_8 = arith.constant 0 : index
    %14 = vector.load %arg5[%c1, %c0_7, %c0_8] : memref<9x8x256xf32, #tpu.memory_space<vmem>>, vector<1x8x256xf32>
    %15 = vector.shape_cast %14 : vector<1x8x256xf32> to vector<8x256xf32>
    %16 = arith.mulf %13, %15 : vector<8x256xf32>
    %c15_i32 = arith.constant 15 : i32
    %17 = tpu.dynamic_rotate %1 by %c15_i32 dim 1 : vector<8x256xf32>, i32 -> vector<8x256xf32>
    %c2 = arith.constant 2 : index
    %c0_9 = arith.constant 0 : index
    %c0_10 = arith.constant 0 : index
    %18 = vector.load %arg5[%c2, %c0_9, %c0_10] : memref<9x8x256xf32, #tpu.memory_space<vmem>>, vector<1x8x256xf32>
    %19 = vector.shape_cast %18 : vector<1x8x256xf32> to vector<8x256xf32>
    %20 = arith.mulf %17, %19 : vector<8x256xf32>
    %c1_i32 = arith.constant 1 : i32
    %21 = tpu.dynamic_rotate %1 by %c1_i32 dim 1 : vector<8x256xf32>, i32 -> vector<8x256xf32>
    %c3 = arith.constant 3 : index
    %c0_11 = arith.constant 0 : index
    %c0_12 = arith.constant 0 : index
    %22 = vector.load %arg5[%c3, %c0_11, %c0_12] : memref<9x8x256xf32, #tpu.memory_space<vmem>>, vector<1x8x256xf32>
    %23 = vector.shape_cast %22 : vector<1x8x256xf32> to vector<8x256xf32>
    %24 = arith.mulf %21, %23 : vector<8x256xf32>
    %c255_i32 = arith.constant 255 : i32
    %25 = tpu.dynamic_rotate %1 by %c255_i32 dim 1 : vector<8x256xf32>, i32 -> vector<8x256xf32>
    %c5 = arith.constant 5 : index
    %c0_13 = arith.constant 0 : index
    %c0_14 = arith.constant 0 : index
    %26 = vector.load %arg5[%c5, %c0_13, %c0_14] : memref<9x8x256xf32, #tpu.memory_space<vmem>>, vector<1x8x256xf32>
    %27 = vector.shape_cast %26 : vector<1x8x256xf32> to vector<8x256xf32>
    %28 = arith.mulf %25, %27 : vector<8x256xf32>
    %c241_i32 = arith.constant 241 : i32
    %29 = tpu.dynamic_rotate %1 by %c241_i32 dim 1 : vector<8x256xf32>, i32 -> vector<8x256xf32>
    %c6 = arith.constant 6 : index
    %c0_15 = arith.constant 0 : index
    %c0_16 = arith.constant 0 : index
    %30 = vector.load %arg5[%c6, %c0_15, %c0_16] : memref<9x8x256xf32, #tpu.memory_space<vmem>>, vector<1x8x256xf32>
    %31 = vector.shape_cast %30 : vector<1x8x256xf32> to vector<8x256xf32>
    %32 = arith.mulf %29, %31 : vector<8x256xf32>
    %c240_i32 = arith.constant 240 : i32
    %33 = tpu.dynamic_rotate %1 by %c240_i32 dim 1 : vector<8x256xf32>, i32 -> vector<8x256xf32>
    %c7 = arith.constant 7 : index
    %c0_17 = arith.constant 0 : index
    %c0_18 = arith.constant 0 : index
    %34 = vector.load %arg5[%c7, %c0_17, %c0_18] : memref<9x8x256xf32, #tpu.memory_space<vmem>>, vector<1x8x256xf32>
    %35 = vector.shape_cast %34 : vector<1x8x256xf32> to vector<8x256xf32>
    %36 = arith.mulf %33, %35 : vector<8x256xf32>
    %c239_i32 = arith.constant 239 : i32
    %37 = tpu.dynamic_rotate %1 by %c239_i32 dim 1 : vector<8x256xf32>, i32 -> vector<8x256xf32>
    %c8 = arith.constant 8 : index
    %c0_19 = arith.constant 0 : index
    %c0_20 = arith.constant 0 : index
    %38 = vector.load %arg5[%c8, %c0_19, %c0_20] : memref<9x8x256xf32, #tpu.memory_space<vmem>>, vector<1x8x256xf32>
    %39 = vector.shape_cast %38 : vector<1x8x256xf32> to vector<8x256xf32>
    %40 = arith.mulf %37, %39 : vector<8x256xf32>
    %41 = tpu.concatenate %12, %16, %20, %24, %1, %28, %32, %36, %40 in 0 : vector<8x256xf32>, vector<8x256xf32>, vector<8x256xf32>, vector<8x256xf32>, vector<8x256xf32>, vector<8x256xf32>, vector<8x256xf32>, vector<8x256xf32>, vector<8x256xf32> -> vector<72x256xf32>
    %c0_21 = arith.constant 0 : index
    %c0_22 = arith.constant 0 : index
    %42 = vector.load %arg2[%c0_21, %c0_22] : memref<8x72xf32, #tpu.memory_space<vmem>>, vector<8x72xf32>
    %cst = arith.constant dense<0.000000e+00> : vector<8x256xf32>
    %43 = tpu.matmul %42, %41, %cst {dimension_numbers = #tpu.dot_dimension_numbers<[1], [0], [0], [1], [0, 0, 1, 1], [], []>} : vector<8x72xf32>, vector<72x256xf32>, vector<8x256xf32> -> vector<8x256xf32>
    %44 = vector.broadcast %5 : vector<8x1xf32> to vector<8x256xf32>
    %45 = arith.addf %43, %44 : vector<8x256xf32>
    %cst_23 = arith.constant 5.000000e-01 : f32
    %46 = vector.broadcast %cst_23 : f32 to vector<8x256xf32>
    %47 = arith.mulf %46, %45 : vector<8x256xf32>
    %48 = math.tanh %47 : vector<8x256xf32>
    %cst_24 = arith.constant 5.000000e-01 : f32
    %49 = vector.broadcast %cst_24 : f32 to vector<8x256xf32>
    %50 = arith.mulf %49, %48 : vector<8x256xf32>
    %cst_25 = arith.constant 5.000000e-01 : f32
    %51 = vector.broadcast %cst_25 : f32 to vector<8x256xf32>
    %52 = arith.addf %50, %51 : vector<8x256xf32>
    %53 = arith.mulf %45, %52 : vector<8x256xf32>
    %cst_26 = arith.constant dense<0.000000e+00> : vector<8xf32>
    %54 = vector.multi_reduction <add>, %53, %cst_26 [1] : vector<8x256xf32> to vector<8xf32>
    %55 = vector.shape_cast %54 : vector<8xf32> to vector<8x1xf32>
    %cst_27 = arith.constant 3.906250e-03 : f32
    %56 = vector.broadcast %cst_27 : f32 to vector<8x1xf32>
    %57 = arith.mulf %55, %56 : vector<8x1xf32>
    %58 = vector.broadcast %57 : vector<8x1xf32> to vector<8x2xf32>
    %59 = arith.mulf %3, %58 : vector<8x2xf32>
    %cst_28 = arith.constant dense<0.000000e+00> : vector<2xf32>
    %60 = vector.multi_reduction <add>, %59, %cst_28 [0] : vector<8x2xf32> to vector<2xf32>
    %61 = vector.shape_cast %60 : vector<2xf32> to vector<1x2xf32>
    %62 = arith.addf %61, %8 : vector<1x2xf32>
    %cst_29 = arith.constant 5.000000e-01 : f32
    %63 = vector.broadcast %cst_29 : f32 to vector<1x2xf32>
    %64 = arith.mulf %63, %62 : vector<1x2xf32>
    %65 = math.tanh %64 : vector<1x2xf32>
    %cst_30 = arith.constant 5.000000e-01 : f32
    %66 = vector.broadcast %cst_30 : f32 to vector<1x2xf32>
    %67 = arith.mulf %66, %65 : vector<1x2xf32>
    %cst_31 = arith.constant 5.000000e-01 : f32
    %68 = vector.broadcast %cst_31 : f32 to vector<1x2xf32>
    %69 = arith.addf %67, %68 : vector<1x2xf32>
    %70 = arith.mulf %62, %69 : vector<1x2xf32>
    %71 = vector.broadcast %70 : vector<1x2xf32> to vector<8x2xf32>
    %72 = arith.mulf %4, %71 : vector<8x2xf32>
    %cst_32 = arith.constant dense<0.000000e+00> : vector<8xf32>
    %73 = vector.multi_reduction <add>, %72, %cst_32 [1] : vector<8x2xf32> to vector<8xf32>
    %74 = vector.shape_cast %73 : vector<8xf32> to vector<8x1xf32>
    %75 = arith.addf %74, %6 : vector<8x1xf32>
    %cst_33 = arith.constant 5.000000e-01 : f32
    %76 = vector.broadcast %cst_33 : f32 to vector<8x1xf32>
    %77 = arith.mulf %76, %75 : vector<8x1xf32>
    %78 = math.tanh %77 : vector<8x1xf32>
    %cst_34 = arith.constant 5.000000e-01 : f32
    %79 = vector.broadcast %cst_34 : f32 to vector<8x1xf32>
    %80 = arith.mulf %79, %78 : vector<8x1xf32>
    %cst_35 = arith.constant 5.000000e-01 : f32
    %81 = vector.broadcast %cst_35 : f32 to vector<8x1xf32>
    %82 = arith.addf %80, %81 : vector<8x1xf32>
    %83 = vector.broadcast %82 : vector<8x1xf32> to vector<8x256xf32>
    %84 = arith.mulf %53, %83 : vector<8x256xf32>
    %cst_36 = arith.constant dense<0.000000e+00> : vector<256xf32>
    %85 = vector.multi_reduction <add>, %84, %cst_36 [0] : vector<8x256xf32> to vector<256xf32>
    %86 = vector.shape_cast %85 : vector<256xf32> to vector<1x256xf32>
    %cst_37 = arith.constant 8.000000e+00 : f32
    %87 = vector.broadcast %cst_37 : f32 to vector<1x256xf32>
    %88 = arith.divf %86, %87 : vector<1x256xf32>
    %cst_38 = arith.constant dense<0xFF800000> : vector<256xf32>
    %89 = vector.multi_reduction <maximumf>, %84, %cst_38 [0] : vector<8x256xf32> to vector<256xf32>
    %90 = vector.shape_cast %89 : vector<256xf32> to vector<1x256xf32>
    %91 = tpu.concatenate %88, %90 in 0 : vector<1x256xf32>, vector<1x256xf32> -> vector<2x256xf32>
    %cst_39 = arith.constant 0.000000e+00 : f32
    %92 = vector.broadcast %cst_39 : f32 to vector<2x256xf32>
    %c0_40 = arith.constant 0 : index
    %c0_41 = arith.constant 0 : index
    %c0_42 = arith.constant 0 : index
    %93 = vector.load %arg6[%c0_40, %c0_41, %c0_42] : memref<49x2x256xf32, #tpu.memory_space<vmem>>, vector<1x2x256xf32>
    %94 = vector.shape_cast %93 : vector<1x2x256xf32> to vector<2x256xf32>
    %c51_i32 = arith.constant 51 : i32
    %95 = tpu.dynamic_rotate %91 by %c51_i32 dim 1 : vector<2x256xf32>, i32 -> vector<2x256xf32>
    %96 = arith.mulf %94, %95 : vector<2x256xf32>
    %97 = arith.addf %92, %96 : vector<2x256xf32>
    %c1_43 = arith.constant 1 : index
    %c0_44 = arith.constant 0 : index
    %c0_45 = arith.constant 0 : index
    %98 = vector.load %arg6[%c1_43, %c0_44, %c0_45] : memref<49x2x256xf32, #tpu.memory_space<vmem>>, vector<1x2x256xf32>
    %99 = vector.shape_cast %98 : vector<1x2x256xf32> to vector<2x256xf32>
    %c50_i32 = arith.constant 50 : i32
    %100 = tpu.dynamic_rotate %91 by %c50_i32 dim 1 : vector<2x256xf32>, i32 -> vector<2x256xf32>
    %101 = arith.mulf %99, %100 : vector<2x256xf32>
    %102 = arith.addf %97, %101 : vector<2x256xf32>
    %c2_46 = arith.constant 2 : index
    %c0_47 = arith.constant 0 : index
    %c0_48 = arith.constant 0 : index
    %103 = vector.load %arg6[%c2_46, %c0_47, %c0_48] : memref<49x2x256xf32, #tpu.memory_space<vmem>>, vector<1x2x256xf32>
    %104 = vector.shape_cast %103 : vector<1x2x256xf32> to vector<2x256xf32>
    %c49_i32 = arith.constant 49 : i32
    %105 = tpu.dynamic_rotate %91 by %c49_i32 dim 1 : vector<2x256xf32>, i32 -> vector<2x256xf32>
    %106 = arith.mulf %104, %105 : vector<2x256xf32>
    %107 = arith.addf %102, %106 : vector<2x256xf32>
    %c3_49 = arith.constant 3 : index
    %c0_50 = arith.constant 0 : index
    %c0_51 = arith.constant 0 : index
    %108 = vector.load %arg6[%c3_49, %c0_50, %c0_51] : memref<49x2x256xf32, #tpu.memory_space<vmem>>, vector<1x2x256xf32>
    %109 = vector.shape_cast %108 : vector<1x2x256xf32> to vector<2x256xf32>
    %c48_i32 = arith.constant 48 : i32
    %110 = tpu.dynamic_rotate %91 by %c48_i32 dim 1 : vector<2x256xf32>, i32 -> vector<2x256xf32>
    %111 = arith.mulf %109, %110 : vector<2x256xf32>
    %112 = arith.addf %107, %111 : vector<2x256xf32>
    %c4 = arith.constant 4 : index
    %c0_52 = arith.constant 0 : index
    %c0_53 = arith.constant 0 : index
    %113 = vector.load %arg6[%c4, %c0_52, %c0_53] : memref<49x2x256xf32, #tpu.memory_space<vmem>>, vector<1x2x256xf32>
    %114 = vector.shape_cast %113 : vector<1x2x256xf32> to vector<2x256xf32>
    %c47_i32 = arith.constant 47 : i32
    %115 = tpu.dynamic_rotate %91 by %c47_i32 dim 1 : vector<2x256xf32>, i32 -> vector<2x256xf32>
    %116 = arith.mulf %114, %115 : vector<2x256xf32>
    %117 = arith.addf %112, %116 : vector<2x256xf32>
    %c5_54 = arith.constant 5 : index
    %c0_55 = arith.constant 0 : index
    %c0_56 = arith.constant 0 : index
    %118 = vector.load %arg6[%c5_54, %c0_55, %c0_56] : memref<49x2x256xf32, #tpu.memory_space<vmem>>, vector<1x2x256xf32>
    %119 = vector.shape_cast %118 : vector<1x2x256xf32> to vector<2x256xf32>
    %c46_i32 = arith.constant 46 : i32
    %120 = tpu.dynamic_rotate %91 by %c46_i32 dim 1 : vector<2x256xf32>, i32 -> vector<2x256xf32>
    %121 = arith.mulf %119, %120 : vector<2x256xf32>
    %122 = arith.addf %117, %121 : vector<2x256xf32>
    %c6_57 = arith.constant 6 : index
    %c0_58 = arith.constant 0 : index
    %c0_59 = arith.constant 0 : index
    %123 = vector.load %arg6[%c6_57, %c0_58, %c0_59] : memref<49x2x256xf32, #tpu.memory_space<vmem>>, vector<1x2x256xf32>
    %124 = vector.shape_cast %123 : vector<1x2x256xf32> to vector<2x256xf32>
    %c45_i32 = arith.constant 45 : i32
    %125 = tpu.dynamic_rotate %91 by %c45_i32 dim 1 : vector<2x256xf32>, i32 -> vector<2x256xf32>
    %126 = arith.mulf %124, %125 : vector<2x256xf32>
    %127 = arith.addf %122, %126 : vector<2x256xf32>
    %c7_60 = arith.constant 7 : index
    %c0_61 = arith.constant 0 : index
    %c0_62 = arith.constant 0 : index
    %128 = vector.load %arg6[%c7_60, %c0_61, %c0_62] : memref<49x2x256xf32, #tpu.memory_space<vmem>>, vector<1x2x256xf32>
    %129 = vector.shape_cast %128 : vector<1x2x256xf32> to vector<2x256xf32>
    %c35_i32 = arith.constant 35 : i32
    %130 = tpu.dynamic_rotate %91 by %c35_i32 dim 1 : vector<2x256xf32>, i32 -> vector<2x256xf32>
    %131 = arith.mulf %129, %130 : vector<2x256xf32>
    %132 = arith.addf %127, %131 : vector<2x256xf32>
    %c8_63 = arith.constant 8 : index
    %c0_64 = arith.constant 0 : index
    %c0_65 = arith.constant 0 : index
    %133 = vector.load %arg6[%c8_63, %c0_64, %c0_65] : memref<49x2x256xf32, #tpu.memory_space<vmem>>, vector<1x2x256xf32>
    %134 = vector.shape_cast %133 : vector<1x2x256xf32> to vector<2x256xf32>
    %c34_i32 = arith.constant 34 : i32
    %135 = tpu.dynamic_rotate %91 by %c34_i32 dim 1 : vector<2x256xf32>, i32 -> vector<2x256xf32>
    %136 = arith.mulf %134, %135 : vector<2x256xf32>
    %137 = arith.addf %132, %136 : vector<2x256xf32>
    %c9 = arith.constant 9 : index
    %c0_66 = arith.constant 0 : index
    %c0_67 = arith.constant 0 : index
    %138 = vector.load %arg6[%c9, %c0_66, %c0_67] : memref<49x2x256xf32, #tpu.memory_space<vmem>>, vector<1x2x256xf32>
    %139 = vector.shape_cast %138 : vector<1x2x256xf32> to vector<2x256xf32>
    %c33_i32 = arith.constant 33 : i32
    %140 = tpu.dynamic_rotate %91 by %c33_i32 dim 1 : vector<2x256xf32>, i32 -> vector<2x256xf32>
    %141 = arith.mulf %139, %140 : vector<2x256xf32>
    %142 = arith.addf %137, %141 : vector<2x256xf32>
    %c10 = arith.constant 10 : index
    %c0_68 = arith.constant 0 : index
    %c0_69 = arith.constant 0 : index
    %143 = vector.load %arg6[%c10, %c0_68, %c0_69] : memref<49x2x256xf32, #tpu.memory_space<vmem>>, vector<1x2x256xf32>
    %144 = vector.shape_cast %143 : vector<1x2x256xf32> to vector<2x256xf32>
    %c32_i32 = arith.constant 32 : i32
    %145 = tpu.dynamic_rotate %91 by %c32_i32 dim 1 : vector<2x256xf32>, i32 -> vector<2x256xf32>
    %146 = arith.mulf %144, %145 : vector<2x256xf32>
    %147 = arith.addf %142, %146 : vector<2x256xf32>
    %c11 = arith.constant 11 : index
    %c0_70 = arith.constant 0 : index
    %c0_71 = arith.constant 0 : index
    %148 = vector.load %arg6[%c11, %c0_70, %c0_71] : memref<49x2x256xf32, #tpu.memory_space<vmem>>, vector<1x2x256xf32>
    %149 = vector.shape_cast %148 : vector<1x2x256xf32> to vector<2x256xf32>
    %c31_i32 = arith.constant 31 : i32
    %150 = tpu.dynamic_rotate %91 by %c31_i32 dim 1 : vector<2x256xf32>, i32 -> vector<2x256xf32>
    %151 = arith.mulf %149, %150 : vector<2x256xf32>
    %152 = arith.addf %147, %151 : vector<2x256xf32>
    %c12 = arith.constant 12 : index
    %c0_72 = arith.constant 0 : index
    %c0_73 = arith.constant 0 : index
    %153 = vector.load %arg6[%c12, %c0_72, %c0_73] : memref<49x2x256xf32, #tpu.memory_space<vmem>>, vector<1x2x256xf32>
    %154 = vector.shape_cast %153 : vector<1x2x256xf32> to vector<2x256xf32>
    %c30_i32 = arith.constant 30 : i32
    %155 = tpu.dynamic_rotate %91 by %c30_i32 dim 1 : vector<2x256xf32>, i32 -> vector<2x256xf32>
    %156 = arith.mulf %154, %155 : vector<2x256xf32>
    %157 = arith.addf %152, %156 : vector<2x256xf32>
    %c13 = arith.constant 13 : index
    %c0_74 = arith.constant 0 : index
    %c0_75 = arith.constant 0 : index
    %158 = vector.load %arg6[%c13, %c0_74, %c0_75] : memref<49x2x256xf32, #tpu.memory_space<vmem>>, vector<1x2x256xf32>
    %159 = vector.shape_cast %158 : vector<1x2x256xf32> to vector<2x256xf32>
    %c29_i32 = arith.constant 29 : i32
    %160 = tpu.dynamic_rotate %91 by %c29_i32 dim 1 : vector<2x256xf32>, i32 -> vector<2x256xf32>
    %161 = arith.mulf %159, %160 : vector<2x256xf32>
    %162 = arith.addf %157, %161 : vector<2x256xf32>
    %c14 = arith.constant 14 : index
    %c0_76 = arith.constant 0 : index
    %c0_77 = arith.constant 0 : index
    %163 = vector.load %arg6[%c14, %c0_76, %c0_77] : memref<49x2x256xf32, #tpu.memory_space<vmem>>, vector<1x2x256xf32>
    %164 = vector.shape_cast %163 : vector<1x2x256xf32> to vector<2x256xf32>
    %c19_i32 = arith.constant 19 : i32
    %165 = tpu.dynamic_rotate %91 by %c19_i32 dim 1 : vector<2x256xf32>, i32 -> vector<2x256xf32>
    %166 = arith.mulf %164, %165 : vector<2x256xf32>
    %167 = arith.addf %162, %166 : vector<2x256xf32>
    %c15 = arith.constant 15 : index
    %c0_78 = arith.constant 0 : index
    %c0_79 = arith.constant 0 : index
    %168 = vector.load %arg6[%c15, %c0_78, %c0_79] : memref<49x2x256xf32, #tpu.memory_space<vmem>>, vector<1x2x256xf32>
    %169 = vector.shape_cast %168 : vector<1x2x256xf32> to vector<2x256xf32>
    %c18_i32 = arith.constant 18 : i32
    %170 = tpu.dynamic_rotate %91 by %c18_i32 dim 1 : vector<2x256xf32>, i32 -> vector<2x256xf32>
    %171 = arith.mulf %169, %170 : vector<2x256xf32>
    %172 = arith.addf %167, %171 : vector<2x256xf32>
    %c16 = arith.constant 16 : index
    %c0_80 = arith.constant 0 : index
    %c0_81 = arith.constant 0 : index
    %173 = vector.load %arg6[%c16, %c0_80, %c0_81] : memref<49x2x256xf32, #tpu.memory_space<vmem>>, vector<1x2x256xf32>
    %174 = vector.shape_cast %173 : vector<1x2x256xf32> to vector<2x256xf32>
    %c17_i32_82 = arith.constant 17 : i32
    %175 = tpu.dynamic_rotate %91 by %c17_i32_82 dim 1 : vector<2x256xf32>, i32 -> vector<2x256xf32>
    %176 = arith.mulf %174, %175 : vector<2x256xf32>
    %177 = arith.addf %172, %176 : vector<2x256xf32>
    %c17 = arith.constant 17 : index
    %c0_83 = arith.constant 0 : index
    %c0_84 = arith.constant 0 : index
    %178 = vector.load %arg6[%c17, %c0_83, %c0_84] : memref<49x2x256xf32, #tpu.memory_space<vmem>>, vector<1x2x256xf32>
    %179 = vector.shape_cast %178 : vector<1x2x256xf32> to vector<2x256xf32>
    %c16_i32_85 = arith.constant 16 : i32
    %180 = tpu.dynamic_rotate %91 by %c16_i32_85 dim 1 : vector<2x256xf32>, i32 -> vector<2x256xf32>
    %181 = arith.mulf %179, %180 : vector<2x256xf32>
    %182 = arith.addf %177, %181 : vector<2x256xf32>
    %c18 = arith.constant 18 : index
    %c0_86 = arith.constant 0 : index
    %c0_87 = arith.constant 0 : index
    %183 = vector.load %arg6[%c18, %c0_86, %c0_87] : memref<49x2x256xf32, #tpu.memory_space<vmem>>, vector<1x2x256xf32>
    %184 = vector.shape_cast %183 : vector<1x2x256xf32> to vector<2x256xf32>
    %c15_i32_88 = arith.constant 15 : i32
    %185 = tpu.dynamic_rotate %91 by %c15_i32_88 dim 1 : vector<2x256xf32>, i32 -> vector<2x256xf32>
    %186 = arith.mulf %184, %185 : vector<2x256xf32>
    %187 = arith.addf %182, %186 : vector<2x256xf32>
    %c19 = arith.constant 19 : index
    %c0_89 = arith.constant 0 : index
    %c0_90 = arith.constant 0 : index
    %188 = vector.load %arg6[%c19, %c0_89, %c0_90] : memref<49x2x256xf32, #tpu.memory_space<vmem>>, vector<1x2x256xf32>
    %189 = vector.shape_cast %188 : vector<1x2x256xf32> to vector<2x256xf32>
    %c14_i32 = arith.constant 14 : i32
    %190 = tpu.dynamic_rotate %91 by %c14_i32 dim 1 : vector<2x256xf32>, i32 -> vector<2x256xf32>
    %191 = arith.mulf %189, %190 : vector<2x256xf32>
    %192 = arith.addf %187, %191 : vector<2x256xf32>
    %c20 = arith.constant 20 : index
    %c0_91 = arith.constant 0 : index
    %c0_92 = arith.constant 0 : index
    %193 = vector.load %arg6[%c20, %c0_91, %c0_92] : memref<49x2x256xf32, #tpu.memory_space<vmem>>, vector<1x2x256xf32>
    %194 = vector.shape_cast %193 : vector<1x2x256xf32> to vector<2x256xf32>
    %c13_i32 = arith.constant 13 : i32
    %195 = tpu.dynamic_rotate %91 by %c13_i32 dim 1 : vector<2x256xf32>, i32 -> vector<2x256xf32>
    %196 = arith.mulf %194, %195 : vector<2x256xf32>
    %197 = arith.addf %192, %196 : vector<2x256xf32>
    %c21 = arith.constant 21 : index
    %c0_93 = arith.constant 0 : index
    %c0_94 = arith.constant 0 : index
    %198 = vector.load %arg6[%c21, %c0_93, %c0_94] : memref<49x2x256xf32, #tpu.memory_space<vmem>>, vector<1x2x256xf32>
    %199 = vector.shape_cast %198 : vector<1x2x256xf32> to vector<2x256xf32>
    %c3_i32 = arith.constant 3 : i32
    %200 = tpu.dynamic_rotate %91 by %c3_i32 dim 1 : vector<2x256xf32>, i32 -> vector<2x256xf32>
    %201 = arith.mulf %199, %200 : vector<2x256xf32>
    %202 = arith.addf %197, %201 : vector<2x256xf32>
    %c22 = arith.constant 22 : index
    %c0_95 = arith.constant 0 : index
    %c0_96 = arith.constant 0 : index
    %203 = vector.load %arg6[%c22, %c0_95, %c0_96] : memref<49x2x256xf32, #tpu.memory_space<vmem>>, vector<1x2x256xf32>
    %204 = vector.shape_cast %203 : vector<1x2x256xf32> to vector<2x256xf32>
    %c2_i32 = arith.constant 2 : i32
    %205 = tpu.dynamic_rotate %91 by %c2_i32 dim 1 : vector<2x256xf32>, i32 -> vector<2x256xf32>
    %206 = arith.mulf %204, %205 : vector<2x256xf32>
    %207 = arith.addf %202, %206 : vector<2x256xf32>
    %c23 = arith.constant 23 : index
    %c0_97 = arith.constant 0 : index
    %c0_98 = arith.constant 0 : index
    %208 = vector.load %arg6[%c23, %c0_97, %c0_98] : memref<49x2x256xf32, #tpu.memory_space<vmem>>, vector<1x2x256xf32>
    %209 = vector.shape_cast %208 : vector<1x2x256xf32> to vector<2x256xf32>
    %c1_i32_99 = arith.constant 1 : i32
    %210 = tpu.dynamic_rotate %91 by %c1_i32_99 dim 1 : vector<2x256xf32>, i32 -> vector<2x256xf32>
    %211 = arith.mulf %209, %210 : vector<2x256xf32>
    %212 = arith.addf %207, %211 : vector<2x256xf32>
    %c24 = arith.constant 24 : index
    %c0_100 = arith.constant 0 : index
    %c0_101 = arith.constant 0 : index
    %213 = vector.load %arg6[%c24, %c0_100, %c0_101] : memref<49x2x256xf32, #tpu.memory_space<vmem>>, vector<1x2x256xf32>
    %214 = vector.shape_cast %213 : vector<1x2x256xf32> to vector<2x256xf32>
    %215 = arith.mulf %214, %91 : vector<2x256xf32>
    %216 = arith.addf %212, %215 : vector<2x256xf32>
    %c25 = arith.constant 25 : index
    %c0_102 = arith.constant 0 : index
    %c0_103 = arith.constant 0 : index
    %217 = vector.load %arg6[%c25, %c0_102, %c0_103] : memref<49x2x256xf32, #tpu.memory_space<vmem>>, vector<1x2x256xf32>
    %218 = vector.shape_cast %217 : vector<1x2x256xf32> to vector<2x256xf32>
    %c255_i32_104 = arith.constant 255 : i32
    %219 = tpu.dynamic_rotate %91 by %c255_i32_104 dim 1 : vector<2x256xf32>, i32 -> vector<2x256xf32>
    %220 = arith.mulf %218, %219 : vector<2x256xf32>
    %221 = arith.addf %216, %220 : vector<2x256xf32>
    %c26 = arith.constant 26 : index
    %c0_105 = arith.constant 0 : index
    %c0_106 = arith.constant 0 : index
    %222 = vector.load %arg6[%c26, %c0_105, %c0_106] : memref<49x2x256xf32, #tpu.memory_space<vmem>>, vector<1x2x256xf32>
    %223 = vector.shape_cast %222 : vector<1x2x256xf32> to vector<2x256xf32>
    %c254_i32 = arith.constant 254 : i32
    %224 = tpu.dynamic_rotate %91 by %c254_i32 dim 1 : vector<2x256xf32>, i32 -> vector<2x256xf32>
    %225 = arith.mulf %223, %224 : vector<2x256xf32>
    %226 = arith.addf %221, %225 : vector<2x256xf32>
    %c27 = arith.constant 27 : index
    %c0_107 = arith.constant 0 : index
    %c0_108 = arith.constant 0 : index
    %227 = vector.load %arg6[%c27, %c0_107, %c0_108] : memref<49x2x256xf32, #tpu.memory_space<vmem>>, vector<1x2x256xf32>
    %228 = vector.shape_cast %227 : vector<1x2x256xf32> to vector<2x256xf32>
    %c253_i32 = arith.constant 253 : i32
    %229 = tpu.dynamic_rotate %91 by %c253_i32 dim 1 : vector<2x256xf32>, i32 -> vector<2x256xf32>
    %230 = arith.mulf %228, %229 : vector<2x256xf32>
    %231 = arith.addf %226, %230 : vector<2x256xf32>
    %c28 = arith.constant 28 : index
    %c0_109 = arith.constant 0 : index
    %c0_110 = arith.constant 0 : index
    %232 = vector.load %arg6[%c28, %c0_109, %c0_110] : memref<49x2x256xf32, #tpu.memory_space<vmem>>, vector<1x2x256xf32>
    %233 = vector.shape_cast %232 : vector<1x2x256xf32> to vector<2x256xf32>
    %c243_i32 = arith.constant 243 : i32
    %234 = tpu.dynamic_rotate %91 by %c243_i32 dim 1 : vector<2x256xf32>, i32 -> vector<2x256xf32>
    %235 = arith.mulf %233, %234 : vector<2x256xf32>
    %236 = arith.addf %231, %235 : vector<2x256xf32>
    %c29 = arith.constant 29 : index
    %c0_111 = arith.constant 0 : index
    %c0_112 = arith.constant 0 : index
    %237 = vector.load %arg6[%c29, %c0_111, %c0_112] : memref<49x2x256xf32, #tpu.memory_space<vmem>>, vector<1x2x256xf32>
    %238 = vector.shape_cast %237 : vector<1x2x256xf32> to vector<2x256xf32>
    %c242_i32 = arith.constant 242 : i32
    %239 = tpu.dynamic_rotate %91 by %c242_i32 dim 1 : vector<2x256xf32>, i32 -> vector<2x256xf32>
    %240 = arith.mulf %238, %239 : vector<2x256xf32>
    %241 = arith.addf %236, %240 : vector<2x256xf32>
    %c30 = arith.constant 30 : index
    %c0_113 = arith.constant 0 : index
    %c0_114 = arith.constant 0 : index
    %242 = vector.load %arg6[%c30, %c0_113, %c0_114] : memref<49x2x256xf32, #tpu.memory_space<vmem>>, vector<1x2x256xf32>
    %243 = vector.shape_cast %242 : vector<1x2x256xf32> to vector<2x256xf32>
    %c241_i32_115 = arith.constant 241 : i32
    %244 = tpu.dynamic_rotate %91 by %c241_i32_115 dim 1 : vector<2x256xf32>, i32 -> vector<2x256xf32>
    %245 = arith.mulf %243, %244 : vector<2x256xf32>
    %246 = arith.addf %241, %245 : vector<2x256xf32>
    %c31 = arith.constant 31 : index
    %c0_116 = arith.constant 0 : index
    %c0_117 = arith.constant 0 : index
    %247 = vector.load %arg6[%c31, %c0_116, %c0_117] : memref<49x2x256xf32, #tpu.memory_space<vmem>>, vector<1x2x256xf32>
    %248 = vector.shape_cast %247 : vector<1x2x256xf32> to vector<2x256xf32>
    %c240_i32_118 = arith.constant 240 : i32
    %249 = tpu.dynamic_rotate %91 by %c240_i32_118 dim 1 : vector<2x256xf32>, i32 -> vector<2x256xf32>
    %250 = arith.mulf %248, %249 : vector<2x256xf32>
    %251 = arith.addf %246, %250 : vector<2x256xf32>
    %c32 = arith.constant 32 : index
    %c0_119 = arith.constant 0 : index
    %c0_120 = arith.constant 0 : index
    %252 = vector.load %arg6[%c32, %c0_119, %c0_120] : memref<49x2x256xf32, #tpu.memory_space<vmem>>, vector<1x2x256xf32>
    %253 = vector.shape_cast %252 : vector<1x2x256xf32> to vector<2x256xf32>
    %c239_i32_121 = arith.constant 239 : i32
    %254 = tpu.dynamic_rotate %91 by %c239_i32_121 dim 1 : vector<2x256xf32>, i32 -> vector<2x256xf32>
    %255 = arith.mulf %253, %254 : vector<2x256xf32>
    %256 = arith.addf %251, %255 : vector<2x256xf32>
    %c33 = arith.constant 33 : index
    %c0_122 = arith.constant 0 : index
    %c0_123 = arith.constant 0 : index
    %257 = vector.load %arg6[%c33, %c0_122, %c0_123] : memref<49x2x256xf32, #tpu.memory_space<vmem>>, vector<1x2x256xf32>
    %258 = vector.shape_cast %257 : vector<1x2x256xf32> to vector<2x256xf32>
    %c238_i32 = arith.constant 238 : i32
    %259 = tpu.dynamic_rotate %91 by %c238_i32 dim 1 : vector<2x256xf32>, i32 -> vector<2x256xf32>
    %260 = arith.mulf %258, %259 : vector<2x256xf32>
    %261 = arith.addf %256, %260 : vector<2x256xf32>
    %c34 = arith.constant 34 : index
    %c0_124 = arith.constant 0 : index
    %c0_125 = arith.constant 0 : index
    %262 = vector.load %arg6[%c34, %c0_124, %c0_125] : memref<49x2x256xf32, #tpu.memory_space<vmem>>, vector<1x2x256xf32>
    %263 = vector.shape_cast %262 : vector<1x2x256xf32> to vector<2x256xf32>
    %c237_i32 = arith.constant 237 : i32
    %264 = tpu.dynamic_rotate %91 by %c237_i32 dim 1 : vector<2x256xf32>, i32 -> vector<2x256xf32>
    %265 = arith.mulf %263, %264 : vector<2x256xf32>
    %266 = arith.addf %261, %265 : vector<2x256xf32>
    %c35 = arith.constant 35 : index
    %c0_126 = arith.constant 0 : index
    %c0_127 = arith.constant 0 : index
    %267 = vector.load %arg6[%c35, %c0_126, %c0_127] : memref<49x2x256xf32, #tpu.memory_space<vmem>>, vector<1x2x256xf32>
    %268 = vector.shape_cast %267 : vector<1x2x256xf32> to vector<2x256xf32>
    %c227_i32 = arith.constant 227 : i32
    %269 = tpu.dynamic_rotate %91 by %c227_i32 dim 1 : vector<2x256xf32>, i32 -> vector<2x256xf32>
    %270 = arith.mulf %268, %269 : vector<2x256xf32>
    %271 = arith.addf %266, %270 : vector<2x256xf32>
    %c36 = arith.constant 36 : index
    %c0_128 = arith.constant 0 : index
    %c0_129 = arith.constant 0 : index
    %272 = vector.load %arg6[%c36, %c0_128, %c0_129] : memref<49x2x256xf32, #tpu.memory_space<vmem>>, vector<1x2x256xf32>
    %273 = vector.shape_cast %272 : vector<1x2x256xf32> to vector<2x256xf32>
    %c226_i32 = arith.constant 226 : i32
    %274 = tpu.dynamic_rotate %91 by %c226_i32 dim 1 : vector<2x256xf32>, i32 -> vector<2x256xf32>
    %275 = arith.mulf %273, %274 : vector<2x256xf32>
    %276 = arith.addf %271, %275 : vector<2x256xf32>
    %c37 = arith.constant 37 : index
    %c0_130 = arith.constant 0 : index
    %c0_131 = arith.constant 0 : index
    %277 = vector.load %arg6[%c37, %c0_130, %c0_131] : memref<49x2x256xf32, #tpu.memory_space<vmem>>, vector<1x2x256xf32>
    %278 = vector.shape_cast %277 : vector<1x2x256xf32> to vector<2x256xf32>
    %c225_i32 = arith.constant 225 : i32
    %279 = tpu.dynamic_rotate %91 by %c225_i32 dim 1 : vector<2x256xf32>, i32 -> vector<2x256xf32>
    %280 = arith.mulf %278, %279 : vector<2x256xf32>
    %281 = arith.addf %276, %280 : vector<2x256xf32>
    %c38 = arith.constant 38 : index
    %c0_132 = arith.constant 0 : index
    %c0_133 = arith.constant 0 : index
    %282 = vector.load %arg6[%c38, %c0_132, %c0_133] : memref<49x2x256xf32, #tpu.memory_space<vmem>>, vector<1x2x256xf32>
    %283 = vector.shape_cast %282 : vector<1x2x256xf32> to vector<2x256xf32>
    %c224_i32 = arith.constant 224 : i32
    %284 = tpu.dynamic_rotate %91 by %c224_i32 dim 1 : vector<2x256xf32>, i32 -> vector<2x256xf32>
    %285 = arith.mulf %283, %284 : vector<2x256xf32>
    %286 = arith.addf %281, %285 : vector<2x256xf32>
    %c39 = arith.constant 39 : index
    %c0_134 = arith.constant 0 : index
    %c0_135 = arith.constant 0 : index
    %287 = vector.load %arg6[%c39, %c0_134, %c0_135] : memref<49x2x256xf32, #tpu.memory_space<vmem>>, vector<1x2x256xf32>
    %288 = vector.shape_cast %287 : vector<1x2x256xf32> to vector<2x256xf32>
    %c223_i32 = arith.constant 223 : i32
    %289 = tpu.dynamic_rotate %91 by %c223_i32 dim 1 : vector<2x256xf32>, i32 -> vector<2x256xf32>
    %290 = arith.mulf %288, %289 : vector<2x256xf32>
    %291 = arith.addf %286, %290 : vector<2x256xf32>
    %c40 = arith.constant 40 : index
    %c0_136 = arith.constant 0 : index
    %c0_137 = arith.constant 0 : index
    %292 = vector.load %arg6[%c40, %c0_136, %c0_137] : memref<49x2x256xf32, #tpu.memory_space<vmem>>, vector<1x2x256xf32>
    %293 = vector.shape_cast %292 : vector<1x2x256xf32> to vector<2x256xf32>
    %c222_i32 = arith.constant 222 : i32
    %294 = tpu.dynamic_rotate %91 by %c222_i32 dim 1 : vector<2x256xf32>, i32 -> vector<2x256xf32>
    %295 = arith.mulf %293, %294 : vector<2x256xf32>
    %296 = arith.addf %291, %295 : vector<2x256xf32>
    %c41 = arith.constant 41 : index
    %c0_138 = arith.constant 0 : index
    %c0_139 = arith.constant 0 : index
    %297 = vector.load %arg6[%c41, %c0_138, %c0_139] : memref<49x2x256xf32, #tpu.memory_space<vmem>>, vector<1x2x256xf32>
    %298 = vector.shape_cast %297 : vector<1x2x256xf32> to vector<2x256xf32>
    %c221_i32 = arith.constant 221 : i32
    %299 = tpu.dynamic_rotate %91 by %c221_i32 dim 1 : vector<2x256xf32>, i32 -> vector<2x256xf32>
    %300 = arith.mulf %298, %299 : vector<2x256xf32>
    %301 = arith.addf %296, %300 : vector<2x256xf32>
    %c42 = arith.constant 42 : index
    %c0_140 = arith.constant 0 : index
    %c0_141 = arith.constant 0 : index
    %302 = vector.load %arg6[%c42, %c0_140, %c0_141] : memref<49x2x256xf32, #tpu.memory_space<vmem>>, vector<1x2x256xf32>
    %303 = vector.shape_cast %302 : vector<1x2x256xf32> to vector<2x256xf32>
    %c211_i32 = arith.constant 211 : i32
    %304 = tpu.dynamic_rotate %91 by %c211_i32 dim 1 : vector<2x256xf32>, i32 -> vector<2x256xf32>
    %305 = arith.mulf %303, %304 : vector<2x256xf32>
    %306 = arith.addf %301, %305 : vector<2x256xf32>
    %c43 = arith.constant 43 : index
    %c0_142 = arith.constant 0 : index
    %c0_143 = arith.constant 0 : index
    %307 = vector.load %arg6[%c43, %c0_142, %c0_143] : memref<49x2x256xf32, #tpu.memory_space<vmem>>, vector<1x2x256xf32>
    %308 = vector.shape_cast %307 : vector<1x2x256xf32> to vector<2x256xf32>
    %c210_i32 = arith.constant 210 : i32
    %309 = tpu.dynamic_rotate %91 by %c210_i32 dim 1 : vector<2x256xf32>, i32 -> vector<2x256xf32>
    %310 = arith.mulf %308, %309 : vector<2x256xf32>
    %311 = arith.addf %306, %310 : vector<2x256xf32>
    %c44 = arith.constant 44 : index
    %c0_144 = arith.constant 0 : index
    %c0_145 = arith.constant 0 : index
    %312 = vector.load %arg6[%c44, %c0_144, %c0_145] : memref<49x2x256xf32, #tpu.memory_space<vmem>>, vector<1x2x256xf32>
    %313 = vector.shape_cast %312 : vector<1x2x256xf32> to vector<2x256xf32>
    %c209_i32 = arith.constant 209 : i32
    %314 = tpu.dynamic_rotate %91 by %c209_i32 dim 1 : vector<2x256xf32>, i32 -> vector<2x256xf32>
    %315 = arith.mulf %313, %314 : vector<2x256xf32>
    %316 = arith.addf %311, %315 : vector<2x256xf32>
    %c45 = arith.constant 45 : index
    %c0_146 = arith.constant 0 : index
    %c0_147 = arith.constant 0 : index
    %317 = vector.load %arg6[%c45, %c0_146, %c0_147] : memref<49x2x256xf32, #tpu.memory_space<vmem>>, vector<1x2x256xf32>
    %318 = vector.shape_cast %317 : vector<1x2x256xf32> to vector<2x256xf32>
    %c208_i32 = arith.constant 208 : i32
    %319 = tpu.dynamic_rotate %91 by %c208_i32 dim 1 : vector<2x256xf32>, i32 -> vector<2x256xf32>
    %320 = arith.mulf %318, %319 : vector<2x256xf32>
    %321 = arith.addf %316, %320 : vector<2x256xf32>
    %c46 = arith.constant 46 : index
    %c0_148 = arith.constant 0 : index
    %c0_149 = arith.constant 0 : index
    %322 = vector.load %arg6[%c46, %c0_148, %c0_149] : memref<49x2x256xf32, #tpu.memory_space<vmem>>, vector<1x2x256xf32>
    %323 = vector.shape_cast %322 : vector<1x2x256xf32> to vector<2x256xf32>
    %c207_i32 = arith.constant 207 : i32
    %324 = tpu.dynamic_rotate %91 by %c207_i32 dim 1 : vector<2x256xf32>, i32 -> vector<2x256xf32>
    %325 = arith.mulf %323, %324 : vector<2x256xf32>
    %326 = arith.addf %321, %325 : vector<2x256xf32>
    %c47 = arith.constant 47 : index
    %c0_150 = arith.constant 0 : index
    %c0_151 = arith.constant 0 : index
    %327 = vector.load %arg6[%c47, %c0_150, %c0_151] : memref<49x2x256xf32, #tpu.memory_space<vmem>>, vector<1x2x256xf32>
    %328 = vector.shape_cast %327 : vector<1x2x256xf32> to vector<2x256xf32>
    %c206_i32 = arith.constant 206 : i32
    %329 = tpu.dynamic_rotate %91 by %c206_i32 dim 1 : vector<2x256xf32>, i32 -> vector<2x256xf32>
    %330 = arith.mulf %328, %329 : vector<2x256xf32>
    %331 = arith.addf %326, %330 : vector<2x256xf32>
    %c48 = arith.constant 48 : index
    %c0_152 = arith.constant 0 : index
    %c0_153 = arith.constant 0 : index
    %332 = vector.load %arg6[%c48, %c0_152, %c0_153] : memref<49x2x256xf32, #tpu.memory_space<vmem>>, vector<1x2x256xf32>
    %333 = vector.shape_cast %332 : vector<1x2x256xf32> to vector<2x256xf32>
    %c205_i32 = arith.constant 205 : i32
    %334 = tpu.dynamic_rotate %91 by %c205_i32 dim 1 : vector<2x256xf32>, i32 -> vector<2x256xf32>
    %335 = arith.mulf %333, %334 : vector<2x256xf32>
    %336 = arith.addf %331, %335 : vector<2x256xf32>
    %337 = vector.extract_strided_slice %336 {offsets = [0, 0], sizes = [1, 256], strides = [1, 1]} : vector<2x256xf32> to vector<1x256xf32>
    %338 = vector.extract_strided_slice %336 {offsets = [1, 0], sizes = [1, 256], strides = [1, 1]} : vector<2x256xf32> to vector<1x256xf32>
    %339 = arith.addf %337, %338 : vector<1x256xf32>
    %cst_154 = arith.constant 5.000000e-01 : f32
    %340 = vector.broadcast %cst_154 : f32 to vector<1x256xf32>
    %341 = arith.mulf %340, %339 : vector<1x256xf32>
    %342 = math.tanh %341 : vector<1x256xf32>
    %cst_155 = arith.constant 5.000000e-01 : f32
    %343 = vector.broadcast %cst_155 : f32 to vector<1x256xf32>
    %344 = arith.mulf %343, %342 : vector<1x256xf32>
    %cst_156 = arith.constant 5.000000e-01 : f32
    %345 = vector.broadcast %cst_156 : f32 to vector<1x256xf32>
    %346 = arith.addf %344, %345 : vector<1x256xf32>
    %347 = vector.broadcast %346 : vector<1x256xf32> to vector<8x256xf32>
    %348 = arith.mulf %84, %347 : vector<8x256xf32>
    %c0_157 = arith.constant 0 : index
    %c0_158 = arith.constant 0 : index
    %349 = vector.load %arg3[%c0_157, %c0_158] : memref<8x8xf32, #tpu.memory_space<vmem>>, vector<8x8xf32>
    %cst_159 = arith.constant dense<0.000000e+00> : vector<8x256xf32>
    %350 = tpu.matmul %349, %348, %cst_159 {dimension_numbers = #tpu.dot_dimension_numbers<[1], [0], [0], [1], [0, 0, 1, 1], [], []>} : vector<8x8xf32>, vector<8x256xf32>, vector<8x256xf32> -> vector<8x256xf32>
    %351 = vector.broadcast %7 : vector<8x1xf32> to vector<8x256xf32>
    %352 = arith.addf %350, %351 : vector<8x256xf32>
    %cst_160 = arith.constant 5.000000e-01 : f32
    %353 = vector.broadcast %cst_160 : f32 to vector<8x256xf32>
    %354 = arith.mulf %353, %352 : vector<8x256xf32>
    %355 = math.tanh %354 : vector<8x256xf32>
    %cst_161 = arith.constant 5.000000e-01 : f32
    %356 = vector.broadcast %cst_161 : f32 to vector<8x256xf32>
    %357 = arith.mulf %356, %355 : vector<8x256xf32>
    %cst_162 = arith.constant 5.000000e-01 : f32
    %358 = vector.broadcast %cst_162 : f32 to vector<8x256xf32>
    %359 = arith.addf %357, %358 : vector<8x256xf32>
    %360 = arith.mulf %352, %359 : vector<8x256xf32>
    %c0_163 = arith.constant 0 : index
    %c0_164 = arith.constant 0 : index
    %c0_165 = arith.constant 0 : index
    %361 = vector.load %arg7[%c0_163, %c0_164, %c0_165] : memref<1x8x256xf32, #tpu.memory_space<vmem>>, vector<1x8x256xf32>
    %362 = vector.shape_cast %361 : vector<1x8x256xf32> to vector<8x256xf32>
    %363 = vector.shape_cast %360 : vector<8x256xf32> to vector<1x8x256xf32>
    tpu.vector_store %arg7[%c0_163, %c0_164, %c0_165], %363 {strides = array<i32>} : memref<1x8x256xf32, #tpu.memory_space<vmem>>, vector<1x8x256xf32>,
    return
  }
  func.func @transform_0(%arg0: i32) -> (i32, i32, i32) {
    %c0_i32 = arith.constant 0 : i32
    %c0_i32_0 = arith.constant 0 : i32
    %c0_i32_1 = arith.constant 0 : i32
    return %arg0, %c0_i32, %c0_i32_0 : i32, i32, i32
  }
  func.func @transform_1(%arg0: i32) -> (i32, i32) {
    %c0_i32 = arith.constant 0 : i32
    %c0_i32_0 = arith.constant 0 : i32
    %c0_i32_1 = arith.constant 0 : i32
    return %c0_i32, %c0_i32_0 : i32, i32
  }
  func.func @transform_2(%arg0: i32) -> (i32, i32) {
    %c0_i32 = arith.constant 0 : i32
    %c0_i32_0 = arith.constant 0 : i32
    %c0_i32_1 = arith.constant 0 : i32
    return %c0_i32, %c0_i32_0 : i32, i32
  }
  func.func @transform_3(%arg0: i32) -> (i32, i32) {
    %c0_i32 = arith.constant 0 : i32
    %c0_i32_0 = arith.constant 0 : i32
    %c0_i32_1 = arith.constant 0 : i32
    return %c0_i32, %c0_i32_0 : i32, i32
  }
  func.func @transform_4(%arg0: i32) -> (i32, i32, i32) {
    %c0_i32 = arith.constant 0 : i32
    %c0_i32_0 = arith.constant 0 : i32
    %c0_i32_1 = arith.constant 0 : i32
    %c0_i32_2 = arith.constant 0 : i32
    return %c0_i32, %c0_i32_0, %c0_i32_1 : i32, i32, i32
  }
  func.func @transform_5(%arg0: i32) -> (i32, i32, i32) {
    %c0_i32 = arith.constant 0 : i32
    %c0_i32_0 = arith.constant 0 : i32
    %c0_i32_1 = arith.constant 0 : i32
    %c0_i32_2 = arith.constant 0 : i32
    return %c0_i32, %c0_i32_0, %c0_i32_1 : i32, i32, i32
  }
  func.func @transform_6(%arg0: i32) -> (i32, i32, i32) {
    %c0_i32 = arith.constant 0 : i32
    %c0_i32_0 = arith.constant 0 : i32
    %c0_i32_1 = arith.constant 0 : i32
    return %arg0, %c0_i32, %c0_i32_0 : i32, i32, i32
  }
}

</mosaic_0001>

<llo_original>
// kernel: tpu_custom_call.1
$region0: #{tpu_custom_call.1}
  #allocation0 [shape = 'u32[]', space=smem, size = 0x4, offset = 0x4, fixed_abs, tag = 'smem constant byte address 0x4 - core index']
  #allocation1 [shape = 'u32[144,128]{1,0:T(1,128)}', space=vmem, size = 0x12000, scoped, tag = 'internal scratch']
  %s0 = inlined_call_operand.hbm [shape: f32[2,8,256], index: 0, kind: input, shape index: {}]
  %s1 = inlined_call_operand.hbm [shape: f32[8,72], index: 1, kind: input, shape index: {}]
  %s2 = inlined_call_operand.hbm [shape: f32[8,8], index: 2, kind: input, shape index: {}]
  %s3 = inlined_call_operand.vmem [shape: f32[8,9], index: 3, kind: input, shape index: {}]
  %s4 = inlined_call_operand.hbm [shape: f32[9,8,256], index: 4, kind: input, shape index: {}]
  %s5 = inlined_call_operand.hbm [shape: f32[49,2,256], index: 5, kind: input, shape index: {}]
  %s6 = inlined_call_operand.hbm [shape: f32[2,8,256], index: 6, kind: output, shape index: {}]
  %s7 = sld [smem:[#allocation0]]
  $region77: #{tpu_custom_call.1} parent=0
    _
  %s9 = ssub.s32 1, %s7
  %s10 = scalar_select 0, %s9, %s7
  $region1: #{tpu_custom_call.1} parent=0
    #allocation2 [shape = 'u8[16384]{0}', space=vmem, size = 0x4000, scoped, tag = 'input window, operand 0']
    #allocation3 [shape = 's32[2]{0}', space=sflag, size = 0x8, scoped, tag = 'scoped memory for tpu_custom_call.1']
    #allocation4 [shape = 's32[2]{0}', space=sflag, size = 0x8, scoped, tag = 'scoped memory for tpu_custom_call.1']
    #allocation5 [shape = 'u8[4096]{0}', space=vmem, size = 0x1000, scoped, tag = 'input window, operand 1, single buffered']
    #allocation6 [shape = 's32[1]{0}', space=sflag, size = 0x4, scoped, tag = 'scoped memory for tpu_custom_call.1']
    #allocation7 [shape = 'u8[4096]{0}', space=vmem, size = 0x1000, scoped, tag = 'input window, operand 2, single buffered']
    #allocation8 [shape = 'u8[73728]{0}', space=vmem, size = 0x12000, scoped, tag = 'input window, operand 4, single buffered']
    #allocation9 [shape = 's32[1]{0}', space=sflag, size = 0x4, scoped, tag = 'scoped memory for tpu_custom_call.1']
    #allocation10 [shape = 'u8[100352]{0}', space=vmem, size = 0x18800, scoped, tag = 'input window, operand 5, single buffered']
    #allocation11 [shape = 'u8[16384]{0}', space=vmem, size = 0x4000, scoped, tag = 'output window, operand 0']
    %11 = vsyncpa [#allocation3], 0
    %s12 = scalar_lea.sflag [#allocation3], 1
    %13 = vsyncpa %s12, 0
    %14 = vsyncpa [#allocation6], 0
    %15 = vsyncpa [#allocation9], 0
    %16 = vsyncpa [#allocation4], 0
    %s17 = scalar_lea.sflag [#allocation4], 1
    %18 = vsyncpa %s17, 0
    loop: start=0, step=1, limit=4
    $region2: #{tpu_custom_call.1} parent=1 // loop_pre_header
      _
    $region3: #{tpu_custom_call.1} parent=1 // loop_header
      %s20 = sphi 0, %s24
      %p21 = scmp.ge.s32.totalorder %s20, 4
      %s30 = sphi 0, %s32
      %s33 = sphi 0, %s30
      %s34 = sphi 0, %s33
      %s50 = sphi 0, %s34
      %s54 = sphi 0, %s54
      %s56 = sphi 0, %s54
      %s57 = sphi 0, %s56
      %s71 = sphi 0, %s57
      %s75 = sphi 0, %s75
      %s77 = sphi 0, %s75
      %s78 = sphi 0, %s77
      %s92 = sphi 0, %s78
      %s96 = sphi 0, %s96
      %s98 = sphi 0, %s96
      %s99 = sphi 0, %s98
      %s113 = sphi 0, %s99
      %s117 = sphi 0, %s117
      %s119 = sphi 0, %s117
      %s120 = sphi 0, %s119
      %s134 = sphi 0, %s120
      %s138 = sphi 0, %s138
      %s140 = sphi 0, %s138
      %s141 = sphi 0, %s140
      %s155 = sphi 0, %s141
      %s161 = sphi 0, %s163
      %s164 = sphi 0, %s161
      %s165 = sphi 0, %s164
      %s181 = sphi 0, %s165
    $region4: #{tpu_custom_call.1} parent=1 // loop_header_branch
      %23 = sbr.rel (%p21) target = $region8
    $region5: #{tpu_custom_call.1} parent=1 // loop_body
      %s25 = ssub.s32 %s20, 1
      %s26 = ssub.s32 %s20, 2
      %s27 = sadd.s32 %s20, 1
      %s28 = ssub.s32 %s20, %s27
      %p29 = scmp.eq.s32.totalorder %s28, 0
      %s31 = sadd.s32 %s30, 1
      %s32 = scalar_select %p29, %s30, %s31
      %p35 = pneg %p29
      %p36 = scmp.eq.s32.totalorder %s20, 1
      %p37 = por %p35, %p36
      %p38 = scmp.ne.s32.totalorder %s30, %s33
      %p39 = scmp.eq.s32.totalorder %s20, 0
      %p40 = por %p38, %p39
      %p41 = scmp.ne.s32.totalorder %s30, %s33
      %p42 = scmp.eq.s32.totalorder %s25, 1
      %p43 = por %p41, %p42
      %p44 = scmp.ne.s32.totalorder %s33, %s34
      %p45 = scmp.eq.s32.totalorder %s25, 0
      %p46 = por %p44, %p45
      %p47 = scmp.ne.s32.totalorder %s33, %s34
      %p48 = scmp.eq.s32.totalorder %s26, 1
      %p49 = por %p47, %p48
      %p51 = scmp.ne.s32.totalorder %s34, %s50
      %p52 = scmp.eq.s32.totalorder %s26, 0
      %p53 = por %p51, %p52
      %s55 = sadd.s32 %s54, 1
      %p58 = scmp.eq.s32.totalorder %s20, 1
      %p59 = scmp.ne.s32.totalorder %s54, %s56
      %p60 = scmp.eq.s32.totalorder %s20, 0
      %p61 = por %p59, %p60
      %p62 = scmp.ne.s32.totalorder %s54, %s56
      %p63 = scmp.eq.s32.totalorder %s25, 1
      %p64 = por %p62, %p63
      %p65 = scmp.ne.s32.totalorder %s56, %s57
      %p66 = scmp.eq.s32.totalorder %s25, 0
      %p67 = por %p65, %p66
      %p68 = scmp.ne.s32.totalorder %s56, %s57
      %p69 = scmp.eq.s32.totalorder %s26, 1
      %p70 = por %p68, %p69
      %p72 = scmp.ne.s32.totalorder %s57, %s71
      %p73 = scmp.eq.s32.totalorder %s26, 0
      %p74 = por %p72, %p73
      %s76 = sadd.s32 %s75, 1
      %p79 = scmp.eq.s32.totalorder %s20, 1
      %p80 = scmp.ne.s32.totalorder %s75, %s77
      %p81 = scmp.eq.s32.totalorder %s20, 0
      %p82 = por %p80, %p81
      %p83 = scmp.ne.s32.totalorder %s75, %s77
      %p84 = scmp.eq.s32.totalorder %s25, 1
      %p85 = por %p83, %p84
      %p86 = scmp.ne.s32.totalorder %s77, %s78
      %p87 = scmp.eq.s32.totalorder %s25, 0
      %p88 = por %p86, %p87
      %p89 = scmp.ne.s32.totalorder %s77, %s78
      %p90 = scmp.eq.s32.totalorder %s26, 1
      %p91 = por %p89, %p90
      %p93 = scmp.ne.s32.totalorder %s78, %s92
      %p94 = scmp.eq.s32.totalorder %s26, 0
      %p95 = por %p93, %p94
      %s97 = sadd.s32 %s96, 1
      %p100 = scmp.eq.s32.totalorder %s20, 1
      %p101 = scmp.ne.s32.totalorder %s96, %s98
      %p102 = scmp.eq.s32.totalorder %s20, 0
      %p103 = por %p101, %p102
      %p104 = scmp.ne.s32.totalorder %s96, %s98
      %p105 = scmp.eq.s32.totalorder %s25, 1
      %p106 = por %p104, %p105
      %p107 = scmp.ne.s32.totalorder %s98, %s99
      %p108 = scmp.eq.s32.totalorder %s25, 0
      %p109 = por %p107, %p108
      %p110 = scmp.ne.s32.totalorder %s98, %s99
      %p111 = scmp.eq.s32.totalorder %s26, 1
      %p112 = por %p110, %p111
      %p114 = scmp.ne.s32.totalorder %s99, %s113
      %p115 = scmp.eq.s32.totalorder %s26, 0
      %p116 = por %p114, %p115
      %s118 = sadd.s32 %s117, 1
      %p121 = scmp.eq.s32.totalorder %s20, 1
      %p122 = scmp.ne.s32.totalorder %s117, %s119
      %p123 = scmp.eq.s32.totalorder %s20, 0
      %p124 = por %p122, %p123
      %p125 = scmp.ne.s32.totalorder %s117, %s119
      %p126 = scmp.eq.s32.totalorder %s25, 1
      %p127 = por %p125, %p126
      %p128 = scmp.ne.s32.totalorder %s119, %s120
      %p129 = scmp.eq.s32.totalorder %s25, 0
      %p130 = por %p128, %p129
      %p131 = scmp.ne.s32.totalorder %s119, %s120
      %p132 = scmp.eq.s32.totalorder %s26, 1
      %p133 = por %p131, %p132
      %p135 = scmp.ne.s32.totalorder %s120, %s134
      %p136 = scmp.eq.s32.totalorder %s26, 0
      %p137 = por %p135, %p136
      %s139 = sadd.s32 %s138, 1
      %p142 = scmp.eq.s32.totalorder %s20, 1
      %p143 = scmp.ne.s32.totalorder %s138, %s140
      %p144 = scmp.eq.s32.totalorder %s20, 0
      %p145 = por %p143, %p144
      %p146 = scmp.ne.s32.totalorder %s138, %s140
      %p147 = scmp.eq.s32.totalorder %s25, 1
      %p148 = por %p146, %p147
      %p149 = scmp.ne.s32.totalorder %s140, %s141
      %p150 = scmp.eq.s32.totalorder %s25, 0
      %p151 = por %p149, %p150
      %p152 = scmp.ne.s32.totalorder %s140, %s141
      %p153 = scmp.eq.s32.totalorder %s26, 1
      %p154 = por %p152, %p153
      %p156 = scmp.ne.s32.totalorder %s141, %s155
      %p157 = scmp.eq.s32.totalorder %s26, 0
      %p158 = por %p156, %p157
      %s159 = ssub.s32 %s20, %s27
      %p160 = scmp.eq.s32.totalorder %s159, 0
      %s162 = sadd.s32 %s161, 1
      %s163 = scalar_select %p160, %s161, %s162
      %p166 = pneg %p160
      %p167 = scmp.eq.s32.totalorder %s20, 1
      %p168 = por %p166, %p167
      %p169 = scmp.ne.s32.totalorder %s161, %s164
      %p170 = scmp.eq.s32.totalorder %s20, 0
      %p171 = por %p169, %p170
      %p172 = scmp.ne.s32.totalorder %s161, %s164
      %p173 = scmp.eq.s32.totalorder %s25, 1
      %p174 = por %p172, %p173
      %p175 = scmp.ne.s32.totalorder %s164, %s165
      %p176 = scmp.eq.s32.totalorder %s25, 0
      %p177 = por %p175, %p176
      %p178 = scmp.ne.s32.totalorder %s164, %s165
      %p179 = scmp.eq.s32.totalorder %s26, 1
      %p180 = por %p178, %p179
      %p182 = scmp.ne.s32.totalorder %s165, %s181
      %p183 = scmp.eq.s32.totalorder %s26, 0
      %p184 = por %p182, %p183
      %p185 = scmp.le.s32.totalorder 1, %s20
      %p186 = scmp.lt.s32.totalorder %s20, 3
      %p187 = pnand %p185, %p186
      %p188 = pneg %p187
      // Predicated region
      $region9: #{tpu_custom_call.1} parent=5 // pred_check
        _
      $region10: #{tpu_custom_call.1} parent=5 // pred_check_branch
        %190 = sbr.rel (%p187) target = $region12
      $region11: #{tpu_custom_call.1} parent=5 // pred_region
        %s191 = ssub.s32 %s20, 1
        // Predicated region
        $region13: #{tpu_custom_call.1} parent=11 // pred_check
          %p192 = pneg %p67
        $region14: #{tpu_custom_call.1} parent=11 // pred_check_branch
          %194 = sbr.rel (%p192) target = $region16
        $region15: #{tpu_custom_call.1} parent=11 // pred_region
          %s196 = ssub.s32 128, 128
          %197 = vsyncadd [#allocation6], %s196
          %s199 = sshll.u32 [#allocation5], 4
          %s200 = int_to_ptr.vmem [resolvable:$true] %s199
          %202 = dma.hbm_to_vmem [thread:$0]  %s1, 128, %s200, [#allocation6]
        $region16: #{tpu_custom_call.1} parent=11 // pred_fallthru
          _
        // Predicated region
        $region17: #{tpu_custom_call.1} parent=11 // pred_check
          %p203 = pneg %p88
        $region18: #{tpu_custom_call.1} parent=11 // pred_check_branch
          %205 = sbr.rel (%p203) target = $region20
        $region19: #{tpu_custom_call.1} parent=11 // pred_region
          %s207 = ssub.s32 128, 128
          %208 = vsyncadd [#allocation6], %s207
          %s210 = sshll.u32 [#allocation7], 4
          %s211 = int_to_ptr.vmem [resolvable:$true] %s210
          %213 = dma.hbm_to_vmem [thread:$0]  %s2, 128, %s211, [#allocation6]
        $region20: #{tpu_custom_call.1} parent=11 // pred_fallthru
          _
        // Predicated region
        $region21: #{tpu_custom_call.1} parent=11 // pred_check
          %p214 = pneg %p109
        $region22: #{tpu_custom_call.1} parent=11 // pred_check_branch
          %216 = sbr.rel (%p214) target = $region24
        $region23: #{tpu_custom_call.1} parent=11 // pred_region
          _
        $region24: #{tpu_custom_call.1} parent=11 // pred_fallthru
          _
        // Predicated region
        $region25: #{tpu_custom_call.1} parent=11 // pred_check
          %p217 = pneg %p130
        $region26: #{tpu_custom_call.1} parent=11 // pred_check_branch
          %219 = sbr.rel (%p217) target = $region28
        $region27: #{tpu_custom_call.1} parent=11 // pred_region
          %s221 = ssub.s32 2304, 2304
          %222 = vsyncadd [#allocation9], %s221
          %s223 = sshll.u32 [#allocation8], 4
          %s224 = int_to_ptr.vmem [resolvable:$true] %s223
          %229 = dma.hbm_to_vmem [thread:$0]  %s4, 2304, %s224, [#allocation9], 256, 256, 16
        $region28: #{tpu_custom_call.1} parent=11 // pred_fallthru
          _
        // Predicated region
        $region29: #{tpu_custom_call.1} parent=11 // pred_check
          %p230 = pneg %p151
        $region30: #{tpu_custom_call.1} parent=11 // pred_check_branch
          %232 = sbr.rel (%p230) target = $region32
        $region31: #{tpu_custom_call.1} parent=11 // pred_region
          %s234 = ssub.s32 3136, 3136
          %235 = vsyncadd [#allocation9], %s234
          %s236 = sshll.u32 [#allocation10], 4
          %s237 = int_to_ptr.vmem [resolvable:$true] %s236
          %242 = dma.hbm_to_vmem [thread:$0]  %s5, 3136, %s237, [#allocation9], 64, 64, 4
        $region32: #{tpu_custom_call.1} parent=11 // pred_fallthru
          _
      $region12: #{tpu_custom_call.1} parent=5 // pred_fallthru
        _
      %p243 = scmp.lt.s32.totalorder %s20, 2
      // Predicated region
      $region33: #{tpu_custom_call.1} parent=5 // pred_check
        %p244 = pneg %p243
      $region34: #{tpu_custom_call.1} parent=5 // pred_check_branch
        %246 = sbr.rel (%p244) target = $region36
      $region35: #{tpu_custom_call.1} parent=5 // pred_region
        // Predicated region
        $region37: #{tpu_custom_call.1} parent=35 // pred_check
          %p247 = pneg %p40
        $region38: #{tpu_custom_call.1} parent=35 // pred_check_branch
          %249 = sbr.rel (%p247) target = $region40
        $region39: #{tpu_custom_call.1} parent=35 // pred_region
          %s250 = sand.u32 %s30, 1
          %s251 = scalar_lea.sflag [#allocation3], %s250
          %s252 = sand.u32 %s30, 1
          %s253 = smul.addr %s252, 16
          %s254 = scalar_lea.vmem [#allocation2], %s253
          %s256 = ssub.s32 256, 256
          %257 = vsyncadd %s251, %s256
          %s258 = smul.addr %s20, 2
          %s259 = smul.addr %s258, 128
          %s260 = scalar_lea.hbm %s0, %s259
          %s262 = sshll.u32 %s254, 4
          %s263 = int_to_ptr.vmem [resolvable:$true] %s262
          %265 = dma.hbm_to_vmem [thread:$0]  %s260, 256, %s263, %s251
        $region40: #{tpu_custom_call.1} parent=35 // pred_fallthru
          _
      $region36: #{tpu_custom_call.1} parent=5 // pred_fallthru
        _
      %p266 = scmp.le.s32.totalorder 1, %s20
      %p267 = scmp.lt.s32.totalorder %s20, 3
      %p268 = pnand %p266, %p267
      %p269 = pneg %p268
      // Predicated region
      $region41: #{tpu_custom_call.1} parent=5 // pred_check
        _
      $region42: #{tpu_custom_call.1} parent=5 // pred_check_branch
        %271 = sbr.rel (%p268) target = $region44
      $region43: #{tpu_custom_call.1} parent=5 // pred_region
        %s272 = ssub.s32 %s20, 1
        %s273 = sand.u32 %s33, 1
        %s274 = scalar_lea.sflag [#allocation3], %s273
        %s275 = sand.u32 %s33, 1
        %s276 = smul.addr %s275, 16
        %s277 = scalar_lea.vmem [#allocation2], %s276
        // Predicated region
        $region45: #{tpu_custom_call.1} parent=43 // pred_check
          %p278 = pneg %p46
        $region46: #{tpu_custom_call.1} parent=43 // pred_check_branch
          %280 = sbr.rel (%p278) target = $region48
        $region47: #{tpu_custom_call.1} parent=43 // pred_region
          %281 = dma.done %s274, 256
        $region48: #{tpu_custom_call.1} parent=43 // pred_fallthru
          _
        // Predicated region
        $region49: #{tpu_custom_call.1} parent=43 // pred_check
          %p282 = pneg %p67
        $region50: #{tpu_custom_call.1} parent=43 // pred_check_branch
          %284 = sbr.rel (%p282) target = $region52
        $region51: #{tpu_custom_call.1} parent=43 // pred_region
          %285 = dma.done [#allocation6], 128
        $region52: #{tpu_custom_call.1} parent=43 // pred_fallthru
          _
        // Predicated region
        $region53: #{tpu_custom_call.1} parent=43 // pred_check
          %p286 = pneg %p88
        $region54: #{tpu_custom_call.1} parent=43 // pred_check_branch
          %288 = sbr.rel (%p286) target = $region56
        $region55: #{tpu_custom_call.1} parent=43 // pred_region
          %289 = dma.done [#allocation6], 128
        $region56: #{tpu_custom_call.1} parent=43 // pred_fallthru
          _
        // Predicated region
        $region57: #{tpu_custom_call.1} parent=43 // pred_check
          %p290 = pneg %p130
        $region58: #{tpu_custom_call.1} parent=43 // pred_check_branch
          %292 = sbr.rel (%p290) target = $region60
        $region59: #{tpu_custom_call.1} parent=43 // pred_region
          %293 = dma.done [#allocation9], 2304
        $region60: #{tpu_custom_call.1} parent=43 // pred_fallthru
          _
        // Predicated region
        $region61: #{tpu_custom_call.1} parent=43 // pred_check
          %p294 = pneg %p151
        $region62: #{tpu_custom_call.1} parent=43 // pred_check_branch
          %296 = sbr.rel (%p294) target = $region64
        $region63: #{tpu_custom_call.1} parent=43 // pred_region
          %297 = dma.done [#allocation9], 3136
        $region64: #{tpu_custom_call.1} parent=43 // pred_fallthru
          _
        %s298 = sand.u32 %s33, 1
        %s299 = scalar_lea.sflag [#allocation3], %s298
        %s300 = sand.u32 %s33, 1
        %s301 = smul.addr %s300, 16
        %s302 = scalar_lea.vmem [#allocation2], %s301
        %p303 = pneg %p46
        %p304 = pneg %p43
        %p305 = pneg %p67
        %p306 = pneg %p64
        %p307 = pneg %p88
        %p308 = pneg %p85
        %p309 = pneg %p109
        %p310 = pneg %p106
        %p311 = pneg %p130
        %p312 = pneg %p127
        %p313 = pneg %p151
        %p314 = pneg %p148
        %p315 = pneg %p177
        %p316 = pneg %p174
        %s317 = sand.u32 %s164, 1
        %s318 = scalar_lea.sflag [#allocation4], %s317
        %s319 = sand.u32 %s164, 1
        %s320 = smul.addr %s319, 16
        %s321 = scalar_lea.vmem [#allocation11], %s320
        %v322 = vld [vmem:[%s277] sm:$0xff]
        %v323 = vld [vmem:[%s277 + $0x8] sm:$0xff]
        %v324 = vld [vmem:[%s3] sm:$0xff]
        %325 = vrot.lane.b32.xlu0 %v322, 17
        %v326 = vpop.permute.xlu0 %325
        %327 = vrot.lane.b32.xlu0 %v323, 17
        %v328 = vpop.permute.xlu0 %327
        %v329 = vlaneseq
        %v330 = vand.u32 %v329, 127
        %vm331 = vcmp.lt.s32.totalorder %v330, 17
        %v332 = vsel %vm331, %v326, %v328
        %v333 = vsel %vm331, %v328, %v326
        %v334 = vld [vmem:[#allocation8] sm:$0xff]
        %v335 = vld [vmem:[#allocation8 + $0x8] sm:$0xff]
        %v336 = vmul.f32 %v333, %v334
        %v337 = vmul.f32 %v332, %v335
        %338 = vrot.lane.b32.xlu0 %v322, 16
        %v339 = vpop.permute.xlu0 %338
        %340 = vrot.lane.b32.xlu0 %v323, 16
        %v341 = vpop.permute.xlu0 %340
        %vm342 = vcmp.lt.s32.totalorder %v330, 16
        %v343 = vsel %vm342, %v339, %v341
        %v344 = vsel %vm342, %v341, %v339
        %s345 = scalar_lea.vmem [#allocation8], 16
        %v346 = vld [vmem:[%s345] sm:$0xff]
        %v347 = vld [vmem:[%s345 + $0x8] sm:$0xff]
        %v348 = vmul.f32 %v344, %v346
        %v349 = vmul.f32 %v343, %v347
        %350 = vrot.lane.b32.xlu0 %v322, 15
        %v351 = vpop.permute.xlu0 %350
        %352 = vrot.lane.b32.xlu0 %v323, 15
        %v353 = vpop.permute.xlu0 %352
        %vm354 = vcmp.lt.s32.totalorder %v330, 15
        %v355 = vsel %vm354, %v351, %v353
        %v356 = vsel %vm354, %v353, %v351
        %s357 = scalar_lea.vmem [#allocation8], 32
        %v358 = vld [vmem:[%s357] sm:$0xff]
        %v359 = vld [vmem:[%s357 + $0x8] sm:$0xff]
        %v360 = vmul.f32 %v356, %v358
        %v361 = vmul.f32 %v355, %v359
        %362 = vrot.lane.b32.xlu0 %v322, 1
        %v363 = vpop.permute.xlu0 %362
        %364 = vrot.lane.b32.xlu0 %v323, 1
        %v365 = vpop.permute.xlu0 %364
        %vm366 = vcmp.lt.s32.totalorder %v330, 1
        %v367 = vsel %vm366, %v363, %v365
        %v368 = vsel %vm366, %v365, %v363
        %s369 = scalar_lea.vmem [#allocation8], 48
        %v370 = vld [vmem:[%s369] sm:$0xff]
        %v371 = vld [vmem:[%s369 + $0x8] sm:$0xff]
        %v372 = vmul.f32 %v368, %v370
        %v373 = vmul.f32 %v367, %v371
        %374 = vrot.lane.b32.xlu0 %v322, 127
        %v375 = vpop.permute.xlu0 %374
        %376 = vrot.lane.b32.xlu0 %v323, 127
        %v377 = vpop.permute.xlu0 %376
        %vm378 = vcmp.lt.s32.totalorder %v330, 127
        %v379 = vsel %vm378, %v375, %v377
        %v380 = vsel %vm378, %v377, %v375
        %s381 = scalar_lea.vmem [#allocation8], 80
        %v382 = vld [vmem:[%s381] sm:$0xff]
        %v383 = vld [vmem:[%s381 + $0x8] sm:$0xff]
        %v384 = vmul.f32 %v379, %v382
        %v385 = vmul.f32 %v380, %v383
        %386 = vrot.lane.b32.xlu0 %v322, 113
        %v387 = vpop.permute.xlu0 %386
        %388 = vrot.lane.b32.xlu0 %v323, 113
        %v389 = vpop.permute.xlu0 %388
        %vm390 = vcmp.lt.s32.totalorder %v330, 113
        %v391 = vsel %vm390, %v387, %v389
        %v392 = vsel %vm390, %v389, %v387
        %s393 = scalar_lea.vmem [#allocation8], 96
        %v394 = vld [vmem:[%s393] sm:$0xff]
        %v395 = vld [vmem:[%s393 + $0x8] sm:$0xff]
        %v396 = vmul.f32 %v391, %v394
        %v397 = vmul.f32 %v392, %v395
        %398 = vrot.lane.b32.xlu0 %v322, 112
        %v399 = vpop.permute.xlu0 %398
        %400 = vrot.lane.b32.xlu0 %v323, 112
        %v401 = vpop.permute.xlu0 %400
        %vm402 = vcmp.lt.s32.totalorder %v330, 112
        %v403 = vsel %vm402, %v399, %v401
        %v404 = vsel %vm402, %v401, %v399
        %s405 = scalar_lea.vmem [#allocation8], 112
        %v406 = vld [vmem:[%s405] sm:$0xff]
        %v407 = vld [vmem:[%s405 + $0x8] sm:$0xff]
        %v408 = vmul.f32 %v403, %v406
        %v409 = vmul.f32 %v404, %v407
        %410 = vrot.lane.b32.xlu0 %v322, 111
        %v411 = vpop.permute.xlu0 %410
        %412 = vrot.lane.b32.xlu0 %v323, 111
        %v413 = vpop.permute.xlu0 %412
        %vm414 = vcmp.lt.s32.totalorder %v330, 111
        %v415 = vsel %vm414, %v411, %v413
        %v416 = vsel %vm414, %v413, %v411
        %s417 = scalar_lea.vmem [#allocation8], 128
        %v418 = vld [vmem:[%s417] sm:$0xff]
        %v419 = vld [vmem:[%s417 + $0x8] sm:$0xff]
        %v420 = vmul.f32 %v415, %v418
        %v421 = vmul.f32 %v416, %v419
        %v422 = vld [vmem:[#allocation5] sm:$0xff]
        %424 = vset.pattern.permute.xlu0 4
        %425 = vperm.xlu0 %424, %v324
        %v426 = vpop.permute.xlu0 %425
        %vm428 = vcmask 588800
        %v430 = vsel %vm428, %v422, 0
        %432 = vmatprep.subr.mxu0 %v337
        %433 = vmatpush1.msra.mxu0 %v336
        %434 = vmatprep.subr.mxu0 %v349
        %435 = vmatpush1.msra.mxu0 %v348
        %436 = vmatprep.subr.mxu0 %v361
        %437 = vmatpush1.msra.mxu0 %v360
        %438 = vmatprep.subr.mxu0 %v373
        %439 = vmatpush1.msra.mxu0 %v372
        %440 = vmatprep.subr.mxu0 %v323
        %441 = vmatpush1.msra.mxu0 %v322
        %442 = vmatprep.subr.mxu0 %v385
        %443 = vmatpush1.msra.mxu0 %v384
        %444 = vmatprep.subr.mxu0 %v397
        %445 = vmatpush1.msra.mxu0 %v396
        %446 = vmatprep.subr.mxu0 %v409
        %447 = vmatpush1.msra.mxu0 %v408
        %448 = vmatprep.subr.mxu0 %v421
        %449 = vmatpush1.msra.mxu0 %v420
        %450 = vmatprep.subr.mxu0 0.0
        %451 = vmatpush1.msra.mxu0 0.0
        %452 = vmatprep.subr.mxu0 0.0
        %453 = vmatpush1.msra.mxu0 0.0
        %454 = vmatprep.subr.mxu0 0.0
        %455 = vmatpush1.msra.mxu0 0.0
        %456 = vmatprep.subr.mxu0 0.0
        %457 = vmatpush1.msra.mxu0 0.0
        %458 = vmatprep.subr.mxu0 0.0
        %459 = vmatpush1.msra.mxu0 0.0
        %460 = vmatprep.subr.mxu0 0.0
        %461 = vmatpush1.msra.mxu0 0.0
        %462 = vmatprep.subr.mxu0 0.0
        %463 = vmatpush1.msra.mxu0 0.0
        %464 = vmatprep.subr.mxu0 0.0
        %465 = vmatpush1.msra.mxu0 0.0
        %466 = vmatprep.subr.mxu0 0.0
        %467 = vmatpush1.msra.mxu0 0.0
        %468 = vmatprep.subr.mxu0 0.0
        %469 = vmatpush1.msra.mxu0 0.0
        %470 = vmatprep.subr.mxu0 0.0
        %471 = vmatpush1.msra.mxu0 0.0
        %472 = vmatprep.subr.mxu0 0.0
        %473 = vmatpush1.msra.mxu0 0.0
        %474 = vmatprep.subr.mxu0 0.0
        %475 = vmatpush1.msra.mxu0 0.0
        %476 = vmatprep.subr.mxu0 0.0
        %477 = vmatpush1.msra.mxu0 0.0
        %478 = vmatprep.subr.mxu0 0.0
        %479 = vmatpush1.msra.mxu0 0.0
        %480 = vmatprep.subr.mxu0 0.0
        %481 = vmatpush1.msra.mxu0 0.0
        %482 = vmatprep.subr.mxu0 0.0
        %483 = vmatpush1.msra.mxu0 0.0
        %484 = vmatprep.subr.mxu0 0.0
        %485 = vmatpush1.msra.mxu0 0.0
        %486 = vmatprep.subr.mxu0 0.0
        %487 = vmatpush1.msra.mxu0 0.0
        %488 = vmatprep.subr.mxu0 0.0
        %489 = vmatpush1.msra.mxu0 0.0
        %490 = vmatprep.subr.mxu0 0.0
        %491 = vmatpush1.msra.mxu0 0.0
        %492 = vmatprep.subr.mxu0 0.0
        %493 = vmatpush1.msra.mxu0 0.0
        %494 = vmatprep.subr.mxu0 0.0
        %495 = vmatpush1.msra.mxu0 0.0
        %496 = vmatprep.mubr.f32.mxu0 0.0
        %497 = vmatmul.mubr.f32.gmra.mrb[0].mxu0 %v430
        %v498 = vpop.f32.mrb[0].mxu0
        %v499 = vadd.f32 %v426, %v498
        %v500 = vpop.f32.mrb[0].mxu0
        %v501 = vadd.f32 %v426, %v500
        %502 = vdwg.mxu0
        %v503 = vmul.f32 %v499, 0.5
        %v504 = vmul.f32 %v501, 0.5
        %v505 = vtanh.pop %v503
        %v506 = vtanh.pop %v504
        %v507 = vmul.f32 %v505, 0.5
        %v508 = vmul.f32 %v506, 0.5
        %v509 = vadd.f32 %v507, 0.5
        %v510 = vadd.f32 %v508, 0.5
        %v511 = vmul.f32 %v499, %v509
        %v512 = vmul.f32 %v501, %v510
        %v513 = vadd.f32 %v511, %v512
        %514 = vadd.xlane.f32.xlu0 %v513
        %v515 = vpop.xlane.xlu0 %514
        %v516 = vmul.f32 %v515, 0.00390625
        %v517 = vmul.f32 %v324, %v516
        %vm518 = vcmask 15360
        %v519 = vsel %vm518, %v517, 0.0
        %v520 = vrot.slane %v519, 4
        %v521 = vadd.f32 %v519, %v520
        %v522 = vrot.slane %v521, 2
        %v523 = vadd.f32 %v521, %v522
        %v524 = vrot.slane %v523, 1
        %v525 = vadd.f32 %v523, %v524
        %526 = vrot.lane.b32.xlu0 %v324, 121
        %v527 = vpop.permute.xlu0 %526
        %v529 = vadd.f32 %v525, %v527
        %v530 = vmul.f32 %v529, 0.5
        %v531 = vtanh.pop %v530
        %v532 = vmul.f32 %v531, 0.5
        %v533 = vadd.f32 %v532, 0.5
        %v534 = vmul.f32 %v529, %v533
        %v535 = vlaneseq
        %v536 = vshrl.u32 %v535, 7
        %v537 = vsub.s32 0, %v536
        %v538 = vrot.slane %v534, %v537
        %540 = vrot.lane.b32.xlu0 %v538, 2
        %v541 = vpop.permute.xlu0 %540
        %v543 = vmul.f32 %v324, %v541
        %545 = vrot.lane.b32.xlu0 %v543, 126
        %v546 = vpop.permute.xlu0 %545
        %v548 = vsel %vm518, %v546, 0.0
        %549 = vadd.xlane.f32.xlu0 %v548
        %v550 = vpop.xlane.xlu0 %549
        %v551 = vadd.f32 %v550, %v324
        %v552 = vmul.f32 %v551, 0.5
        %v553 = vtanh.pop %v552
        %v554 = vmul.f32 %v553, 0.5
        %v555 = vadd.f32 %v554, 0.5
        %557 = vset.pattern.permute.xlu0 5
        %558 = vperm.xlu0 %557, %v555
        %v559 = vpop.permute.xlu0 %558
        %v561 = vmul.f32 %v511, %v559
        %v562 = vmul.f32 %v512, %v559
        %v563 = vrot.slane %v561, 4
        %v564 = vadd.f32 %v561, %v563
        %v565 = vrot.slane %v564, 2
        %v566 = vadd.f32 %v564, %v565
        %v567 = vrot.slane %v566, 1
        %v568 = vadd.f32 %v566, %v567
        %v569 = vrot.slane %v562, 4
        %v570 = vadd.f32 %v562, %v569
        %v571 = vrot.slane %v570, 2
        %v572 = vadd.f32 %v570, %v571
        %v573 = vrot.slane %v572, 1
        %v574 = vadd.f32 %v572, %v573
        %v575 = vrcp.pop 8.0
        %v576 = vmul.f32 %v568, %v575
        %v577 = vmul.f32 %v574, %v575
        %v578 = vrot.slane %v561, 4
        %v579 = vmax.f32 %v561, %v578
        %v580 = vrot.slane %v579, 2
        %v581 = vmax.f32 %v579, %v580
        %v582 = vrot.slane %v581, 1
        %v583 = vmax.f32 %v581, %v582
        %v584 = vrot.slane %v562, 4
        %v585 = vmax.f32 %v562, %v584
        %v586 = vrot.slane %v585, 2
        %v587 = vmax.f32 %v585, %v586
        %v588 = vrot.slane %v587, 1
        %v589 = vmax.f32 %v587, %v588
        %vm590 = vcmask 1040384
        %v591 = vsel %vm590, %v576, %v583
        %v592 = vsel %vm590, %v577, %v589
        %v593 = vld [vmem:[#allocation10] sm:$0xf]
        %594 = vrot.lane.b32.xlu0 %v591, 51
        %v595 = vpop.permute.xlu0 %594
        %596 = vrot.lane.b32.xlu0 %v592, 51
        %v597 = vpop.permute.xlu0 %596
        %vm598 = vcmp.lt.s32.totalorder %v330, 51
        %v599 = vsel %vm598, %v595, %v597
        %v600 = vsel %vm598, %v597, %v595
        %v603 = vcombine.low %v600, %v599
        %v605 = vunpack.c.l.s4 1983009808
        %v606 = vunpack.c.0.s8 %v605
        %v607 = vlaneseq
        %v608 = vshrl.u32 %v607, 7
        %v609 = vsub.s32 %v606, %v608
        %v610 = vrot.slane %v603, %v609
        %v612 = vmul.f32 %v593, %v610
        %v613 = vadd.f32 %v612, 0.0
        %s614 = scalar_lea.vmem [#allocation10], 4
        %v615 = vld [vmem:[%s614] sm:$0xf]
        %616 = vrot.lane.b32.xlu0 %v591, 50
        %v617 = vpop.permute.xlu0 %616
        %618 = vrot.lane.b32.xlu0 %v592, 50
        %v619 = vpop.permute.xlu0 %618
        %vm620 = vcmp.lt.s32.totalorder %v330, 50
        %v621 = vsel %vm620, %v617, %v619
        %v622 = vsel %vm620, %v619, %v617
        %v625 = vcombine.low %v622, %v621
        %v627 = vunpack.c.l.s4 1983009808
        %v628 = vunpack.c.0.s8 %v627
        %v629 = vlaneseq
        %v630 = vshrl.u32 %v629, 7
        %v631 = vsub.s32 %v628, %v630
        %v632 = vrot.slane %v625, %v631
        %v634 = vmul.f32 %v615, %v632
        %v635 = vadd.f32 %v613, %v634
        %s636 = scalar_lea.vmem [#allocation10], 8
        %v637 = vld [vmem:[%s636] sm:$0xf]
        %638 = vrot.lane.b32.xlu0 %v591, 49
        %v639 = vpop.permute.xlu0 %638
        %640 = vrot.lane.b32.xlu0 %v592, 49
        %v641 = vpop.permute.xlu0 %640
        %vm642 = vcmp.lt.s32.totalorder %v330, 49
        %v643 = vsel %vm642, %v639, %v641
        %v644 = vsel %vm642, %v641, %v639
        %v647 = vcombine.low %v644, %v643
        %v649 = vunpack.c.l.s4 1983009808
        %v650 = vunpack.c.0.s8 %v649
        %v651 = vlaneseq
        %v652 = vshrl.u32 %v651, 7
        %v653 = vsub.s32 %v650, %v652
        %v654 = vrot.slane %v647, %v653
        %v656 = vmul.f32 %v637, %v654
        %v657 = vadd.f32 %v635, %v656
        %s658 = scalar_lea.vmem [#allocation10], 12
        %v659 = vld [vmem:[%s658] sm:$0xf]
        %660 = vrot.lane.b32.xlu0 %v591, 48
        %v661 = vpop.permute.xlu0 %660
        %662 = vrot.lane.b32.xlu0 %v592, 48
        %v663 = vpop.permute.xlu0 %662
        %vm664 = vcmp.lt.s32.totalorder %v330, 48
        %v665 = vsel %vm664, %v661, %v663
        %v666 = vsel %vm664, %v663, %v661
        %v669 = vcombine.low %v666, %v665
        %v671 = vunpack.c.l.s4 1983009808
        %v672 = vunpack.c.0.s8 %v671
        %v673 = vlaneseq
        %v674 = vshrl.u32 %v673, 7
        %v675 = vsub.s32 %v672, %v674
        %v676 = vrot.slane %v669, %v675
        %v678 = vmul.f32 %v659, %v676
        %v679 = vadd.f32 %v657, %v678
        %s680 = scalar_lea.vmem [#allocation10], 16
        %v681 = vld [vmem:[%s680] sm:$0xf]
        %682 = vrot.lane.b32.xlu0 %v591, 47
        %v683 = vpop.permute.xlu0 %682
        %684 = vrot.lane.b32.xlu0 %v592, 47
        %v685 = vpop.permute.xlu0 %684
        %vm686 = vcmp.lt.s32.totalorder %v330, 47
        %v687 = vsel %vm686, %v683, %v685
        %v688 = vsel %vm686, %v685, %v683
        %v691 = vcombine.low %v688, %v687
        %v693 = vunpack.c.l.s4 1983009808
        %v694 = vunpack.c.0.s8 %v693
        %v695 = vlaneseq
        %v696 = vshrl.u32 %v695, 7
        %v697 = vsub.s32 %v694, %v696
        %v698 = vrot.slane %v691, %v697
        %v700 = vmul.f32 %v681, %v698
        %v701 = vadd.f32 %v679, %v700
        %s702 = scalar_lea.vmem [#allocation10], 20
        %v703 = vld [vmem:[%s702] sm:$0xf]
        %704 = vrot.lane.b32.xlu0 %v591, 46
        %v705 = vpop.permute.xlu0 %704
        %706 = vrot.lane.b32.xlu0 %v592, 46
        %v707 = vpop.permute.xlu0 %706
        %vm708 = vcmp.lt.s32.totalorder %v330, 46
        %v709 = vsel %vm708, %v705, %v707
        %v710 = vsel %vm708, %v707, %v705
        %v713 = vcombine.low %v710, %v709
        %v715 = vunpack.c.l.s4 1983009808
        %v716 = vunpack.c.0.s8 %v715
        %v717 = vlaneseq
        %v718 = vshrl.u32 %v717, 7
        %v719 = vsub.s32 %v716, %v718
        %v720 = vrot.slane %v713, %v719
        %v722 = vmul.f32 %v703, %v720
        %v723 = vadd.f32 %v701, %v722
        %s724 = scalar_lea.vmem [#allocation10], 24
        %v725 = vld [vmem:[%s724] sm:$0xf]
        %726 = vrot.lane.b32.xlu0 %v591, 45
        %v727 = vpop.permute.xlu0 %726
        %728 = vrot.lane.b32.xlu0 %v592, 45
        %v729 = vpop.permute.xlu0 %728
        %vm730 = vcmp.lt.s32.totalorder %v330, 45
        %v731 = vsel %vm730, %v727, %v729
        %v732 = vsel %vm730, %v729, %v727
        %v735 = vcombine.low %v732, %v731
        %v737 = vunpack.c.l.s4 1983009808
        %v738 = vunpack.c.0.s8 %v737
        %v739 = vlaneseq
        %v740 = vshrl.u32 %v739, 7
        %v741 = vsub.s32 %v738, %v740
        %v742 = vrot.slane %v735, %v741
        %v744 = vmul.f32 %v725, %v742
        %v745 = vadd.f32 %v723, %v744
        %s746 = scalar_lea.vmem [#allocation10], 28
        %v747 = vld [vmem:[%s746] sm:$0xf]
        %748 = vrot.lane.b32.xlu0 %v591, 35
        %v749 = vpop.permute.xlu0 %748
        %750 = vrot.lane.b32.xlu0 %v592, 35
        %v751 = vpop.permute.xlu0 %750
        %vm752 = vcmp.lt.s32.totalorder %v330, 35
        %v753 = vsel %vm752, %v749, %v751
        %v754 = vsel %vm752, %v751, %v749
        %v757 = vcombine.low %v754, %v753
        %v759 = vunpack.c.l.s4 1983009808
        %v760 = vunpack.c.0.s8 %v759
        %v761 = vlaneseq
        %v762 = vshrl.u32 %v761, 7
        %v763 = vsub.s32 %v760, %v762
        %v764 = vrot.slane %v757, %v763
        %v766 = vmul.f32 %v747, %v764
        %v767 = vadd.f32 %v745, %v766
        %s768 = scalar_lea.vmem [#allocation10], 32
        %v769 = vld [vmem:[%s768] sm:$0xf]
        %770 = vrot.lane.b32.xlu0 %v591, 34
        %v771 = vpop.permute.xlu0 %770
        %772 = vrot.lane.b32.xlu0 %v592, 34
        %v773 = vpop.permute.xlu0 %772
        %vm774 = vcmp.lt.s32.totalorder %v330, 34
        %v775 = vsel %vm774, %v771, %v773
        %v776 = vsel %vm774, %v773, %v771
        %v779 = vcombine.low %v776, %v775
        %v781 = vunpack.c.l.s4 1983009808
        %v782 = vunpack.c.0.s8 %v781
        %v783 = vlaneseq
        %v784 = vshrl.u32 %v783, 7
        %v785 = vsub.s32 %v782, %v784
        %v786 = vrot.slane %v779, %v785
        %v788 = vmul.f32 %v769, %v786
        %v789 = vadd.f32 %v767, %v788
        %s790 = scalar_lea.vmem [#allocation10], 36
        %v791 = vld [vmem:[%s790] sm:$0xf]
        %792 = vrot.lane.b32.xlu0 %v591, 33
        %v793 = vpop.permute.xlu0 %792
        %794 = vrot.lane.b32.xlu0 %v592, 33
        %v795 = vpop.permute.xlu0 %794
        %vm796 = vcmp.lt.s32.totalorder %v330, 33
        %v797 = vsel %vm796, %v793, %v795
        %v798 = vsel %vm796, %v795, %v793
        %v801 = vcombine.low %v798, %v797
        %v803 = vunpack.c.l.s4 1983009808
        %v804 = vunpack.c.0.s8 %v803
        %v805 = vlaneseq
        %v806 = vshrl.u32 %v805, 7
        %v807 = vsub.s32 %v804, %v806
        %v808 = vrot.slane %v801, %v807
        %v810 = vmul.f32 %v791, %v808
        %v811 = vadd.f32 %v789, %v810
        %s812 = scalar_lea.vmem [#allocation10], 40
        %v813 = vld [vmem:[%s812] sm:$0xf]
        %814 = vrot.lane.b32.xlu0 %v591, 32
        %v815 = vpop.permute.xlu0 %814
        %816 = vrot.lane.b32.xlu0 %v592, 32
        %v817 = vpop.permute.xlu0 %816
        %vm818 = vcmp.lt.s32.totalorder %v330, 32
        %v819 = vsel %vm818, %v815, %v817
        %v820 = vsel %vm818, %v817, %v815
        %v823 = vcombine.low %v820, %v819
        %v825 = vunpack.c.l.s4 1983009808
        %v826 = vunpack.c.0.s8 %v825
        %v827 = vlaneseq
        %v828 = vshrl.u32 %v827, 7
        %v829 = vsub.s32 %v826, %v828
        %v830 = vrot.slane %v823, %v829
        %v832 = vmul.f32 %v813, %v830
        %v833 = vadd.f32 %v811, %v832
        %s834 = scalar_lea.vmem [#allocation10], 44
        %v835 = vld [vmem:[%s834] sm:$0xf]
        %836 = vrot.lane.b32.xlu0 %v591, 31
        %v837 = vpop.permute.xlu0 %836
        %838 = vrot.lane.b32.xlu0 %v592, 31
        %v839 = vpop.permute.xlu0 %838
        %vm840 = vcmp.lt.s32.totalorder %v330, 31
        %v841 = vsel %vm840, %v837, %v839
        %v842 = vsel %vm840, %v839, %v837
        %v845 = vcombine.low %v842, %v841
        %v847 = vunpack.c.l.s4 1983009808
        %v848 = vunpack.c.0.s8 %v847
        %v849 = vlaneseq
        %v850 = vshrl.u32 %v849, 7
        %v851 = vsub.s32 %v848, %v850
        %v852 = vrot.slane %v845, %v851
        %v854 = vmul.f32 %v835, %v852
        %v855 = vadd.f32 %v833, %v854
        %s856 = scalar_lea.vmem [#allocation10], 48
        %v857 = vld [vmem:[%s856] sm:$0xf]
        %858 = vrot.lane.b32.xlu0 %v591, 30
        %v859 = vpop.permute.xlu0 %858
        %860 = vrot.lane.b32.xlu0 %v592, 30
        %v861 = vpop.permute.xlu0 %860
        %vm862 = vcmp.lt.s32.totalorder %v330, 30
        %v863 = vsel %vm862, %v859, %v861
        %v864 = vsel %vm862, %v861, %v859
        %v867 = vcombine.low %v864, %v863
        %v869 = vunpack.c.l.s4 1983009808
        %v870 = vunpack.c.0.s8 %v869
        %v871 = vlaneseq
        %v872 = vshrl.u32 %v871, 7
        %v873 = vsub.s32 %v870, %v872
        %v874 = vrot.slane %v867, %v873
        %v876 = vmul.f32 %v857, %v874
        %v877 = vadd.f32 %v855, %v876
        %s878 = scalar_lea.vmem [#allocation10], 52
        %v879 = vld [vmem:[%s878] sm:$0xf]
        %880 = vrot.lane.b32.xlu0 %v591, 29
        %v881 = vpop.permute.xlu0 %880
        %882 = vrot.lane.b32.xlu0 %v592, 29
        %v883 = vpop.permute.xlu0 %882
        %vm884 = vcmp.lt.s32.totalorder %v330, 29
        %v885 = vsel %vm884, %v881, %v883
        %v886 = vsel %vm884, %v883, %v881
        %v889 = vcombine.low %v886, %v885
        %v891 = vunpack.c.l.s4 1983009808
        %v892 = vunpack.c.0.s8 %v891
        %v893 = vlaneseq
        %v894 = vshrl.u32 %v893, 7
        %v895 = vsub.s32 %v892, %v894
        %v896 = vrot.slane %v889, %v895
        %v898 = vmul.f32 %v879, %v896
        %v899 = vadd.f32 %v877, %v898
        %s900 = scalar_lea.vmem [#allocation10], 56
        %v901 = vld [vmem:[%s900] sm:$0xf]
        %902 = vrot.lane.b32.xlu0 %v591, 19
        %v903 = vpop.permute.xlu0 %902
        %904 = vrot.lane.b32.xlu0 %v592, 19
        %v905 = vpop.permute.xlu0 %904
        %vm906 = vcmp.lt.s32.totalorder %v330, 19
        %v907 = vsel %vm906, %v903, %v905
        %v908 = vsel %vm906, %v905, %v903
        %v911 = vcombine.low %v908, %v907
        %v913 = vunpack.c.l.s4 1983009808
        %v914 = vunpack.c.0.s8 %v913
        %v915 = vlaneseq
        %v916 = vshrl.u32 %v915, 7
        %v917 = vsub.s32 %v914, %v916
        %v918 = vrot.slane %v911, %v917
        %v920 = vmul.f32 %v901, %v918
        %v921 = vadd.f32 %v899, %v920
        %s922 = scalar_lea.vmem [#allocation10], 60
        %v923 = vld [vmem:[%s922] sm:$0xf]
        %924 = vrot.lane.b32.xlu0 %v591, 18
        %v925 = vpop.permute.xlu0 %924
        %926 = vrot.lane.b32.xlu0 %v592, 18
        %v927 = vpop.permute.xlu0 %926
        %vm928 = vcmp.lt.s32.totalorder %v330, 18
        %v929 = vsel %vm928, %v925, %v927
        %v930 = vsel %vm928, %v927, %v925
        %v933 = vcombine.low %v930, %v929
        %v935 = vunpack.c.l.s4 1983009808
        %v936 = vunpack.c.0.s8 %v935
        %v937 = vlaneseq
        %v938 = vshrl.u32 %v937, 7
        %v939 = vsub.s32 %v936, %v938
        %v940 = vrot.slane %v933, %v939
        %v942 = vmul.f32 %v923, %v940
        %v943 = vadd.f32 %v921, %v942
        %s944 = scalar_lea.vmem [#allocation10], 64
        %v945 = vld [vmem:[%s944] sm:$0xf]
        %946 = vrot.lane.b32.xlu0 %v591, 17
        %v947 = vpop.permute.xlu0 %946
        %948 = vrot.lane.b32.xlu0 %v592, 17
        %v949 = vpop.permute.xlu0 %948
        %v950 = vsel %vm331, %v947, %v949
        %v951 = vsel %vm331, %v949, %v947
        %v954 = vcombine.low %v951, %v950
        %v956 = vunpack.c.l.s4 1983009808
        %v957 = vunpack.c.0.s8 %v956
        %v958 = vlaneseq
        %v959 = vshrl.u32 %v958, 7
        %v960 = vsub.s32 %v957, %v959
        %v961 = vrot.slane %v954, %v960
        %v963 = vmul.f32 %v945, %v961
        %v964 = vadd.f32 %v943, %v963
        %s965 = scalar_lea.vmem [#allocation10], 68
        %v966 = vld [vmem:[%s965] sm:$0xf]
        %967 = vrot.lane.b32.xlu0 %v591, 16
        %v968 = vpop.permute.xlu0 %967
        %969 = vrot.lane.b32.xlu0 %v592, 16
        %v970 = vpop.permute.xlu0 %969
        %v971 = vsel %vm342, %v968, %v970
        %v972 = vsel %vm342, %v970, %v968
        %v975 = vcombine.low %v972, %v971
        %v977 = vunpack.c.l.s4 1983009808
        %v978 = vunpack.c.0.s8 %v977
        %v979 = vlaneseq
        %v980 = vshrl.u32 %v979, 7
        %v981 = vsub.s32 %v978, %v980
        %v982 = vrot.slane %v975, %v981
        %v984 = vmul.f32 %v966, %v982
        %v985 = vadd.f32 %v964, %v984
        %s986 = scalar_lea.vmem [#allocation10], 72
        %v987 = vld [vmem:[%s986] sm:$0xf]
        %988 = vrot.lane.b32.xlu0 %v591, 15
        %v989 = vpop.permute.xlu0 %988
        %990 = vrot.lane.b32.xlu0 %v592, 15
        %v991 = vpop.permute.xlu0 %990
        %v992 = vsel %vm354, %v989, %v991
        %v993 = vsel %vm354, %v991, %v989
        %v996 = vcombine.low %v993, %v992
        %v998 = vunpack.c.l.s4 1983009808
        %v999 = vunpack.c.0.s8 %v998
        %v1000 = vlaneseq
        %v1001 = vshrl.u32 %v1000, 7
        %v1002 = vsub.s32 %v999, %v1001
        %v1003 = vrot.slane %v996, %v1002
        %v1005 = vmul.f32 %v987, %v1003
        %v1006 = vadd.f32 %v985, %v1005
        %s1007 = scalar_lea.vmem [#allocation10], 76
        %v1008 = vld [vmem:[%s1007] sm:$0xf]
        %1009 = vrot.lane.b32.xlu0 %v591, 14
        %v1010 = vpop.permute.xlu0 %1009
        %1011 = vrot.lane.b32.xlu0 %v592, 14
        %v1012 = vpop.permute.xlu0 %1011
        %vm1013 = vcmp.lt.s32.totalorder %v330, 14
        %v1014 = vsel %vm1013, %v1010, %v1012
        %v1015 = vsel %vm1013, %v1012, %v1010
        %v1018 = vcombine.low %v1015, %v1014
        %v1020 = vunpack.c.l.s4 1983009808
        %v1021 = vunpack.c.0.s8 %v1020
        %v1022 = vlaneseq
        %v1023 = vshrl.u32 %v1022, 7
        %v1024 = vsub.s32 %v1021, %v1023
        %v1025 = vrot.slane %v1018, %v1024
        %v1027 = vmul.f32 %v1008, %v1025
        %v1028 = vadd.f32 %v1006, %v1027
        %s1029 = scalar_lea.vmem [#allocation10], 80
        %v1030 = vld [vmem:[%s1029] sm:$0xf]
        %1031 = vrot.lane.b32.xlu0 %v591, 13
        %v1032 = vpop.permute.xlu0 %1031
        %1033 = vrot.lane.b32.xlu0 %v592, 13
        %v1034 = vpop.permute.xlu0 %1033
        %vm1035 = vcmp.lt.s32.totalorder %v330, 13
        %v1036 = vsel %vm1035, %v1032, %v1034
        %v1037 = vsel %vm1035, %v1034, %v1032
        %v1040 = vcombine.low %v1037, %v1036
        %v1042 = vunpack.c.l.s4 1983009808
        %v1043 = vunpack.c.0.s8 %v1042
        %v1044 = vlaneseq
        %v1045 = vshrl.u32 %v1044, 7
        %v1046 = vsub.s32 %v1043, %v1045
        %v1047 = vrot.slane %v1040, %v1046
        %v1049 = vmul.f32 %v1030, %v1047
        %v1050 = vadd.f32 %v1028, %v1049
        %s1051 = scalar_lea.vmem [#allocation10], 84
        %v1052 = vld [vmem:[%s1051] sm:$0xf]
        %1053 = vrot.lane.b32.xlu0 %v591, 3
        %v1054 = vpop.permute.xlu0 %1053
        %1055 = vrot.lane.b32.xlu0 %v592, 3
        %v1056 = vpop.permute.xlu0 %1055
        %vm1057 = vcmp.lt.s32.totalorder %v330, 3
        %v1058 = vsel %vm1057, %v1054, %v1056
        %v1059 = vsel %vm1057, %v1056, %v1054
        %v1062 = vcombine.low %v1059, %v1058
        %v1064 = vunpack.c.l.s4 1983009808
        %v1065 = vunpack.c.0.s8 %v1064
        %v1066 = vlaneseq
        %v1067 = vshrl.u32 %v1066, 7
        %v1068 = vsub.s32 %v1065, %v1067
        %v1069 = vrot.slane %v1062, %v1068
        %v1071 = vmul.f32 %v1052, %v1069
        %v1072 = vadd.f32 %v1050, %v1071
        %s1073 = scalar_lea.vmem [#allocation10], 88
        %v1074 = vld [vmem:[%s1073] sm:$0xf]
        %1075 = vrot.lane.b32.xlu0 %v591, 2
        %v1076 = vpop.permute.xlu0 %1075
        %1077 = vrot.lane.b32.xlu0 %v592, 2
        %v1078 = vpop.permute.xlu0 %1077
        %vm1079 = vcmp.lt.s32.totalorder %v330, 2
        %v1080 = vsel %vm1079, %v1076, %v1078
        %v1081 = vsel %vm1079, %v1078, %v1076
        %v1084 = vcombine.low %v1081, %v1080
        %v1086 = vunpack.c.l.s4 1983009808
        %v1087 = vunpack.c.0.s8 %v1086
        %v1088 = vlaneseq
        %v1089 = vshrl.u32 %v1088, 7
        %v1090 = vsub.s32 %v1087, %v1089
        %v1091 = vrot.slane %v1084, %v1090
        %v1093 = vmul.f32 %v1074, %v1091
        %v1094 = vadd.f32 %v1072, %v1093
        %s1095 = scalar_lea.vmem [#allocation10], 92
        %v1096 = vld [vmem:[%s1095] sm:$0xf]
        %1097 = vrot.lane.b32.xlu0 %v591, 1
        %v1098 = vpop.permute.xlu0 %1097
        %1099 = vrot.lane.b32.xlu0 %v592, 1
        %v1100 = vpop.permute.xlu0 %1099
        %v1101 = vsel %vm366, %v1098, %v1100
        %v1102 = vsel %vm366, %v1100, %v1098
        %v1105 = vcombine.low %v1102, %v1101
        %v1107 = vunpack.c.l.s4 1983009808
        %v1108 = vunpack.c.0.s8 %v1107
        %v1109 = vlaneseq
        %v1110 = vshrl.u32 %v1109, 7
        %v1111 = vsub.s32 %v1108, %v1110
        %v1112 = vrot.slane %v1105, %v1111
        %v1114 = vmul.f32 %v1096, %v1112
        %v1115 = vadd.f32 %v1094, %v1114
        %s1116 = scalar_lea.vmem [#allocation10], 96
        %v1117 = vld [vmem:[%s1116] sm:$0xf]
        %v1120 = vcombine.low %v591, %v592
        %v1122 = vunpack.c.l.s4 1983009808
        %v1123 = vunpack.c.0.s8 %v1122
        %v1124 = vlaneseq
        %v1125 = vshrl.u32 %v1124, 7
        %v1126 = vsub.s32 %v1123, %v1125
        %v1127 = vrot.slane %v1120, %v1126
        %v1129 = vmul.f32 %v1117, %v1127
        %v1130 = vadd.f32 %v1115, %v1129
        %s1131 = scalar_lea.vmem [#allocation10], 100
        %v1132 = vld [vmem:[%s1131] sm:$0xf]
        %1133 = vrot.lane.b32.xlu0 %v591, 127
        %v1134 = vpop.permute.xlu0 %1133
        %1135 = vrot.lane.b32.xlu0 %v592, 127
        %v1136 = vpop.permute.xlu0 %1135
        %v1137 = vsel %vm378, %v1134, %v1136
        %v1138 = vsel %vm378, %v1136, %v1134
        %v1141 = vcombine.low %v1137, %v1138
        %v1143 = vunpack.c.l.s4 1983009808
        %v1144 = vunpack.c.0.s8 %v1143
        %v1145 = vlaneseq
        %v1146 = vshrl.u32 %v1145, 7
        %v1147 = vsub.s32 %v1144, %v1146
        %v1148 = vrot.slane %v1141, %v1147
        %v1150 = vmul.f32 %v1132, %v1148
        %v1151 = vadd.f32 %v1130, %v1150
        %s1152 = scalar_lea.vmem [#allocation10], 104
        %v1153 = vld [vmem:[%s1152] sm:$0xf]
        %1154 = vrot.lane.b32.xlu0 %v591, 126
        %v1155 = vpop.permute.xlu0 %1154
        %1156 = vrot.lane.b32.xlu0 %v592, 126
        %v1157 = vpop.permute.xlu0 %1156
        %vm1158 = vcmp.lt.s32.totalorder %v330, 126
        %v1159 = vsel %vm1158, %v1155, %v1157
        %v1160 = vsel %vm1158, %v1157, %v1155
        %v1163 = vcombine.low %v1159, %v1160
        %v1165 = vunpack.c.l.s4 1983009808
        %v1166 = vunpack.c.0.s8 %v1165
        %v1167 = vlaneseq
        %v1168 = vshrl.u32 %v1167, 7
        %v1169 = vsub.s32 %v1166, %v1168
        %v1170 = vrot.slane %v1163, %v1169
        %v1172 = vmul.f32 %v1153, %v1170
        %v1173 = vadd.f32 %v1151, %v1172
        %s1174 = scalar_lea.vmem [#allocation10], 108
        %v1175 = vld [vmem:[%s1174] sm:$0xf]
        %1176 = vrot.lane.b32.xlu0 %v591, 125
        %v1177 = vpop.permute.xlu0 %1176
        %1178 = vrot.lane.b32.xlu0 %v592, 125
        %v1179 = vpop.permute.xlu0 %1178
        %vm1180 = vcmp.lt.s32.totalorder %v330, 125
        %v1181 = vsel %vm1180, %v1177, %v1179
        %v1182 = vsel %vm1180, %v1179, %v1177
        %v1185 = vcombine.low %v1181, %v1182
        %v1187 = vunpack.c.l.s4 1983009808
        %v1188 = vunpack.c.0.s8 %v1187
        %v1189 = vlaneseq
        %v1190 = vshrl.u32 %v1189, 7
        %v1191 = vsub.s32 %v1188, %v1190
        %v1192 = vrot.slane %v1185, %v1191
        %v1194 = vmul.f32 %v1175, %v1192
        %v1195 = vadd.f32 %v1173, %v1194
        %s1196 = scalar_lea.vmem [#allocation10], 112
        %v1197 = vld [vmem:[%s1196] sm:$0xf]
        %1198 = vrot.lane.b32.xlu0 %v591, 115
        %v1199 = vpop.permute.xlu0 %1198
        %1200 = vrot.lane.b32.xlu0 %v592, 115
        %v1201 = vpop.permute.xlu0 %1200
        %vm1202 = vcmp.lt.s32.totalorder %v330, 115
        %v1203 = vsel %vm1202, %v1199, %v1201
        %v1204 = vsel %vm1202, %v1201, %v1199
        %v1207 = vcombine.low %v1203, %v1204
        %v1209 = vunpack.c.l.s4 1983009808
        %v1210 = vunpack.c.0.s8 %v1209
        %v1211 = vlaneseq
        %v1212 = vshrl.u32 %v1211, 7
        %v1213 = vsub.s32 %v1210, %v1212
        %v1214 = vrot.slane %v1207, %v1213
        %v1216 = vmul.f32 %v1197, %v1214
        %v1217 = vadd.f32 %v1195, %v1216
        %s1218 = scalar_lea.vmem [#allocation10], 116
        %v1219 = vld [vmem:[%s1218] sm:$0xf]
        %1220 = vrot.lane.b32.xlu0 %v591, 114
        %v1221 = vpop.permute.xlu0 %1220
        %1222 = vrot.lane.b32.xlu0 %v592, 114
        %v1223 = vpop.permute.xlu0 %1222
        %vm1224 = vcmp.lt.s32.totalorder %v330, 114
        %v1225 = vsel %vm1224, %v1221, %v1223
        %v1226 = vsel %vm1224, %v1223, %v1221
        %v1229 = vcombine.low %v1225, %v1226
        %v1231 = vunpack.c.l.s4 1983009808
        %v1232 = vunpack.c.0.s8 %v1231
        %v1233 = vlaneseq
        %v1234 = vshrl.u32 %v1233, 7
        %v1235 = vsub.s32 %v1232, %v1234
        %v1236 = vrot.slane %v1229, %v1235
        %v1238 = vmul.f32 %v1219, %v1236
        %v1239 = vadd.f32 %v1217, %v1238
        %s1240 = scalar_lea.vmem [#allocation10], 120
        %v1241 = vld [vmem:[%s1240] sm:$0xf]
        %1242 = vrot.lane.b32.xlu0 %v591, 113
        %v1243 = vpop.permute.xlu0 %1242
        %1244 = vrot.lane.b32.xlu0 %v592, 113
        %v1245 = vpop.permute.xlu0 %1244
        %v1246 = vsel %vm390, %v1243, %v1245
        %v1247 = vsel %vm390, %v1245, %v1243
        %v1250 = vcombine.low %v1246, %v1247
        %v1252 = vunpack.c.l.s4 1983009808
        %v1253 = vunpack.c.0.s8 %v1252
        %v1254 = vlaneseq
        %v1255 = vshrl.u32 %v1254, 7
        %v1256 = vsub.s32 %v1253, %v1255
        %v1257 = vrot.slane %v1250, %v1256
        %v1259 = vmul.f32 %v1241, %v1257
        %v1260 = vadd.f32 %v1239, %v1259
        %s1261 = scalar_lea.vmem [#allocation10], 124
        %v1262 = vld [vmem:[%s1261] sm:$0xf]
        %1263 = vrot.lane.b32.xlu0 %v591, 112
        %v1264 = vpop.permute.xlu0 %1263
        %1265 = vrot.lane.b32.xlu0 %v592, 112
        %v1266 = vpop.permute.xlu0 %1265
        %v1267 = vsel %vm402, %v1264, %v1266
        %v1268 = vsel %vm402, %v1266, %v1264
        %v1271 = vcombine.low %v1267, %v1268
        %v1273 = vunpack.c.l.s4 1983009808
        %v1274 = vunpack.c.0.s8 %v1273
        %v1275 = vlaneseq
        %v1276 = vshrl.u32 %v1275, 7
        %v1277 = vsub.s32 %v1274, %v1276
        %v1278 = vrot.slane %v1271, %v1277
        %v1280 = vmul.f32 %v1262, %v1278
        %v1281 = vadd.f32 %v1260, %v1280
        %s1282 = scalar_lea.vmem [#allocation10], 128
        %v1283 = vld [vmem:[%s1282] sm:$0xf]
        %1284 = vrot.lane.b32.xlu0 %v591, 111
        %v1285 = vpop.permute.xlu0 %1284
        %1286 = vrot.lane.b32.xlu0 %v592, 111
        %v1287 = vpop.permute.xlu0 %1286
        %v1288 = vsel %vm414, %v1285, %v1287
        %v1289 = vsel %vm414, %v1287, %v1285
        %v1292 = vcombine.low %v1288, %v1289
        %v1294 = vunpack.c.l.s4 1983009808
        %v1295 = vunpack.c.0.s8 %v1294
        %v1296 = vlaneseq
        %v1297 = vshrl.u32 %v1296, 7
        %v1298 = vsub.s32 %v1295, %v1297
        %v1299 = vrot.slane %v1292, %v1298
        %v1301 = vmul.f32 %v1283, %v1299
        %v1302 = vadd.f32 %v1281, %v1301
        %s1303 = scalar_lea.vmem [#allocation10], 132
        %v1304 = vld [vmem:[%s1303] sm:$0xf]
        %1305 = vrot.lane.b32.xlu0 %v591, 110
        %v1306 = vpop.permute.xlu0 %1305
        %1307 = vrot.lane.b32.xlu0 %v592, 110
        %v1308 = vpop.permute.xlu0 %1307
        %vm1309 = vcmp.lt.s32.totalorder %v330, 110
        %v1310 = vsel %vm1309, %v1306, %v1308
        %v1311 = vsel %vm1309, %v1308, %v1306
        %v1314 = vcombine.low %v1310, %v1311
        %v1316 = vunpack.c.l.s4 1983009808
        %v1317 = vunpack.c.0.s8 %v1316
        %v1318 = vlaneseq
        %v1319 = vshrl.u32 %v1318, 7
        %v1320 = vsub.s32 %v1317, %v1319
        %v1321 = vrot.slane %v1314, %v1320
        %v1323 = vmul.f32 %v1304, %v1321
        %v1324 = vadd.f32 %v1302, %v1323
        %s1325 = scalar_lea.vmem [#allocation10], 136
        %v1326 = vld [vmem:[%s1325] sm:$0xf]
        %1327 = vrot.lane.b32.xlu0 %v591, 109
        %v1328 = vpop.permute.xlu0 %1327
        %1329 = vrot.lane.b32.xlu0 %v592, 109
        %v1330 = vpop.permute.xlu0 %1329
        %vm1331 = vcmp.lt.s32.totalorder %v330, 109
        %v1332 = vsel %vm1331, %v1328, %v1330
        %v1333 = vsel %vm1331, %v1330, %v1328
        %v1336 = vcombine.low %v1332, %v1333
        %v1338 = vunpack.c.l.s4 1983009808
        %v1339 = vunpack.c.0.s8 %v1338
        %v1340 = vlaneseq
        %v1341 = vshrl.u32 %v1340, 7
        %v1342 = vsub.s32 %v1339, %v1341
        %v1343 = vrot.slane %v1336, %v1342
        %v1345 = vmul.f32 %v1326, %v1343
        %v1346 = vadd.f32 %v1324, %v1345
        %s1347 = scalar_lea.vmem [#allocation10], 140
        %v1348 = vld [vmem:[%s1347] sm:$0xf]
        %1349 = vrot.lane.b32.xlu0 %v591, 99
        %v1350 = vpop.permute.xlu0 %1349
        %1351 = vrot.lane.b32.xlu0 %v592, 99
        %v1352 = vpop.permute.xlu0 %1351
        %vm1353 = vcmp.lt.s32.totalorder %v330, 99
        %v1354 = vsel %vm1353, %v1350, %v1352
        %v1355 = vsel %vm1353, %v1352, %v1350
        %v1358 = vcombine.low %v1354, %v1355
        %v1360 = vunpack.c.l.s4 1983009808
        %v1361 = vunpack.c.0.s8 %v1360
        %v1362 = vlaneseq
        %v1363 = vshrl.u32 %v1362, 7
        %v1364 = vsub.s32 %v1361, %v1363
        %v1365 = vrot.slane %v1358, %v1364
        %v1367 = vmul.f32 %v1348, %v1365
        %v1368 = vadd.f32 %v1346, %v1367
        %s1369 = scalar_lea.vmem [#allocation10], 144
        %v1370 = vld [vmem:[%s1369] sm:$0xf]
        %1371 = vrot.lane.b32.xlu0 %v591, 98
        %v1372 = vpop.permute.xlu0 %1371
        %1373 = vrot.lane.b32.xlu0 %v592, 98
        %v1374 = vpop.permute.xlu0 %1373
        %vm1375 = vcmp.lt.s32.totalorder %v330, 98
        %v1376 = vsel %vm1375, %v1372, %v1374
        %v1377 = vsel %vm1375, %v1374, %v1372
        %v1380 = vcombine.low %v1376, %v1377
        %v1382 = vunpack.c.l.s4 1983009808
        %v1383 = vunpack.c.0.s8 %v1382
        %v1384 = vlaneseq
        %v1385 = vshrl.u32 %v1384, 7
        %v1386 = vsub.s32 %v1383, %v1385
        %v1387 = vrot.slane %v1380, %v1386
        %v1389 = vmul.f32 %v1370, %v1387
        %v1390 = vadd.f32 %v1368, %v1389
        %s1391 = scalar_lea.vmem [#allocation10], 148
        %v1392 = vld [vmem:[%s1391] sm:$0xf]
        %1393 = vrot.lane.b32.xlu0 %v591, 97
        %v1394 = vpop.permute.xlu0 %1393
        %1395 = vrot.lane.b32.xlu0 %v592, 97
        %v1396 = vpop.permute.xlu0 %1395
        %vm1397 = vcmp.lt.s32.totalorder %v330, 97
        %v1398 = vsel %vm1397, %v1394, %v1396
        %v1399 = vsel %vm1397, %v1396, %v1394
        %v1402 = vcombine.low %v1398, %v1399
        %v1404 = vunpack.c.l.s4 1983009808
        %v1405 = vunpack.c.0.s8 %v1404
        %v1406 = vlaneseq
        %v1407 = vshrl.u32 %v1406, 7
        %v1408 = vsub.s32 %v1405, %v1407
        %v1409 = vrot.slane %v1402, %v1408
        %v1411 = vmul.f32 %v1392, %v1409
        %v1412 = vadd.f32 %v1390, %v1411
        %s1413 = scalar_lea.vmem [#allocation10], 152
        %v1414 = vld [vmem:[%s1413] sm:$0xf]
        %1415 = vrot.lane.b32.xlu0 %v591, 96
        %v1416 = vpop.permute.xlu0 %1415
        %1417 = vrot.lane.b32.xlu0 %v592, 96
        %v1418 = vpop.permute.xlu0 %1417
        %vm1419 = vcmp.lt.s32.totalorder %v330, 96
        %v1420 = vsel %vm1419, %v1416, %v1418
        %v1421 = vsel %vm1419, %v1418, %v1416
        %v1424 = vcombine.low %v1420, %v1421
        %v1426 = vunpack.c.l.s4 1983009808
        %v1427 = vunpack.c.0.s8 %v1426
        %v1428 = vlaneseq
        %v1429 = vshrl.u32 %v1428, 7
        %v1430 = vsub.s32 %v1427, %v1429
        %v1431 = vrot.slane %v1424, %v1430
        %v1433 = vmul.f32 %v1414, %v1431
        %v1434 = vadd.f32 %v1412, %v1433
        %s1435 = scalar_lea.vmem [#allocation10], 156
        %v1436 = vld [vmem:[%s1435] sm:$0xf]
        %1437 = vrot.lane.b32.xlu0 %v591, 95
        %v1438 = vpop.permute.xlu0 %1437
        %1439 = vrot.lane.b32.xlu0 %v592, 95
        %v1440 = vpop.permute.xlu0 %1439
        %vm1441 = vcmp.lt.s32.totalorder %v330, 95
        %v1442 = vsel %vm1441, %v1438, %v1440
        %v1443 = vsel %vm1441, %v1440, %v1438
        %v1446 = vcombine.low %v1442, %v1443
        %v1448 = vunpack.c.l.s4 1983009808
        %v1449 = vunpack.c.0.s8 %v1448
        %v1450 = vlaneseq
        %v1451 = vshrl.u32 %v1450, 7
        %v1452 = vsub.s32 %v1449, %v1451
        %v1453 = vrot.slane %v1446, %v1452
        %v1455 = vmul.f32 %v1436, %v1453
        %v1456 = vadd.f32 %v1434, %v1455
        %s1457 = scalar_lea.vmem [#allocation10], 160
        %v1458 = vld [vmem:[%s1457] sm:$0xf]
        %1459 = vrot.lane.b32.xlu0 %v591, 94
        %v1460 = vpop.permute.xlu0 %1459
        %1461 = vrot.lane.b32.xlu0 %v592, 94
        %v1462 = vpop.permute.xlu0 %1461
        %vm1463 = vcmp.lt.s32.totalorder %v330, 94
        %v1464 = vsel %vm1463, %v1460, %v1462
        %v1465 = vsel %vm1463, %v1462, %v1460
        %v1468 = vcombine.low %v1464, %v1465
        %v1470 = vunpack.c.l.s4 1983009808
        %v1471 = vunpack.c.0.s8 %v1470
        %v1472 = vlaneseq
        %v1473 = vshrl.u32 %v1472, 7
        %v1474 = vsub.s32 %v1471, %v1473
        %v1475 = vrot.slane %v1468, %v1474
        %v1477 = vmul.f32 %v1458, %v1475
        %v1478 = vadd.f32 %v1456, %v1477
        %s1479 = scalar_lea.vmem [#allocation10], 164
        %v1480 = vld [vmem:[%s1479] sm:$0xf]
        %1481 = vrot.lane.b32.xlu0 %v591, 93
        %v1482 = vpop.permute.xlu0 %1481
        %1483 = vrot.lane.b32.xlu0 %v592, 93
        %v1484 = vpop.permute.xlu0 %1483
        %vm1485 = vcmp.lt.s32.totalorder %v330, 93
        %v1486 = vsel %vm1485, %v1482, %v1484
        %v1487 = vsel %vm1485, %v1484, %v1482
        %v1490 = vcombine.low %v1486, %v1487
        %v1492 = vunpack.c.l.s4 1983009808
        %v1493 = vunpack.c.0.s8 %v1492
        %v1494 = vlaneseq
        %v1495 = vshrl.u32 %v1494, 7
        %v1496 = vsub.s32 %v1493, %v1495
        %v1497 = vrot.slane %v1490, %v1496
        %v1499 = vmul.f32 %v1480, %v1497
        %v1500 = vadd.f32 %v1478, %v1499
        %s1501 = scalar_lea.vmem [#allocation10], 168
        %v1502 = vld [vmem:[%s1501] sm:$0xf]
        %1503 = vrot.lane.b32.xlu0 %v591, 83
        %v1504 = vpop.permute.xlu0 %1503
        %1505 = vrot.lane.b32.xlu0 %v592, 83
        %v1506 = vpop.permute.xlu0 %1505
        %vm1507 = vcmp.lt.s32.totalorder %v330, 83
        %v1508 = vsel %vm1507, %v1504, %v1506
        %v1509 = vsel %vm1507, %v1506, %v1504
        %v1512 = vcombine.low %v1508, %v1509
        %v1514 = vunpack.c.l.s4 1983009808
        %v1515 = vunpack.c.0.s8 %v1514
        %v1516 = vlaneseq
        %v1517 = vshrl.u32 %v1516, 7
        %v1518 = vsub.s32 %v1515, %v1517
        %v1519 = vrot.slane %v1512, %v1518
        %v1521 = vmul.f32 %v1502, %v1519
        %v1522 = vadd.f32 %v1500, %v1521
        %s1523 = scalar_lea.vmem [#allocation10], 172
        %v1524 = vld [vmem:[%s1523] sm:$0xf]
        %1525 = vrot.lane.b32.xlu0 %v591, 82
        %v1526 = vpop.permute.xlu0 %1525
        %1527 = vrot.lane.b32.xlu0 %v592, 82
        %v1528 = vpop.permute.xlu0 %1527
        %vm1529 = vcmp.lt.s32.totalorder %v330, 82
        %v1530 = vsel %vm1529, %v1526, %v1528
        %v1531 = vsel %vm1529, %v1528, %v1526
        %v1534 = vcombine.low %v1530, %v1531
        %v1536 = vunpack.c.l.s4 1983009808
        %v1537 = vunpack.c.0.s8 %v1536
        %v1538 = vlaneseq
        %v1539 = vshrl.u32 %v1538, 7
        %v1540 = vsub.s32 %v1537, %v1539
        %v1541 = vrot.slane %v1534, %v1540
        %v1543 = vmul.f32 %v1524, %v1541
        %v1544 = vadd.f32 %v1522, %v1543
        %s1545 = scalar_lea.vmem [#allocation10], 176
        %v1546 = vld [vmem:[%s1545] sm:$0xf]
        %1547 = vrot.lane.b32.xlu0 %v591, 81
        %v1548 = vpop.permute.xlu0 %1547
        %1549 = vrot.lane.b32.xlu0 %v592, 81
        %v1550 = vpop.permute.xlu0 %1549
        %vm1551 = vcmp.lt.s32.totalorder %v330, 81
        %v1552 = vsel %vm1551, %v1548, %v1550
        %v1553 = vsel %vm1551, %v1550, %v1548
        %v1556 = vcombine.low %v1552, %v1553
        %v1558 = vunpack.c.l.s4 1983009808
        %v1559 = vunpack.c.0.s8 %v1558
        %v1560 = vlaneseq
        %v1561 = vshrl.u32 %v1560, 7
        %v1562 = vsub.s32 %v1559, %v1561
        %v1563 = vrot.slane %v1556, %v1562
        %v1565 = vmul.f32 %v1546, %v1563
        %v1566 = vadd.f32 %v1544, %v1565
        %s1567 = scalar_lea.vmem [#allocation10], 180
        %v1568 = vld [vmem:[%s1567] sm:$0xf]
        %1569 = vrot.lane.b32.xlu0 %v591, 80
        %v1570 = vpop.permute.xlu0 %1569
        %1571 = vrot.lane.b32.xlu0 %v592, 80
        %v1572 = vpop.permute.xlu0 %1571
        %vm1573 = vcmp.lt.s32.totalorder %v330, 80
        %v1574 = vsel %vm1573, %v1570, %v1572
        %v1575 = vsel %vm1573, %v1572, %v1570
        %v1578 = vcombine.low %v1574, %v1575
        %v1580 = vunpack.c.l.s4 1983009808
        %v1581 = vunpack.c.0.s8 %v1580
        %v1582 = vlaneseq
        %v1583 = vshrl.u32 %v1582, 7
        %v1584 = vsub.s32 %v1581, %v1583
        %v1585 = vrot.slane %v1578, %v1584
        %v1587 = vmul.f32 %v1568, %v1585
        %v1588 = vadd.f32 %v1566, %v1587
        %s1589 = scalar_lea.vmem [#allocation10], 184
        %v1590 = vld [vmem:[%s1589] sm:$0xf]
        %1591 = vrot.lane.b32.xlu0 %v591, 79
        %v1592 = vpop.permute.xlu0 %1591
        %1593 = vrot.lane.b32.xlu0 %v592, 79
        %v1594 = vpop.permute.xlu0 %1593
        %vm1595 = vcmp.lt.s32.totalorder %v330, 79
        %v1596 = vsel %vm1595, %v1592, %v1594
        %v1597 = vsel %vm1595, %v1594, %v1592
        %v1600 = vcombine.low %v1596, %v1597
        %v1602 = vunpack.c.l.s4 1983009808
        %v1603 = vunpack.c.0.s8 %v1602
        %v1604 = vlaneseq
        %v1605 = vshrl.u32 %v1604, 7
        %v1606 = vsub.s32 %v1603, %v1605
        %v1607 = vrot.slane %v1600, %v1606
        %v1609 = vmul.f32 %v1590, %v1607
        %v1610 = vadd.f32 %v1588, %v1609
        %s1611 = scalar_lea.vmem [#allocation10], 188
        %v1612 = vld [vmem:[%s1611] sm:$0xf]
        %1613 = vrot.lane.b32.xlu0 %v591, 78
        %v1614 = vpop.permute.xlu0 %1613
        %1615 = vrot.lane.b32.xlu0 %v592, 78
        %v1616 = vpop.permute.xlu0 %1615
        %vm1617 = vcmp.lt.s32.totalorder %v330, 78
        %v1618 = vsel %vm1617, %v1614, %v1616
        %v1619 = vsel %vm1617, %v1616, %v1614
        %v1622 = vcombine.low %v1618, %v1619
        %v1624 = vunpack.c.l.s4 1983009808
        %v1625 = vunpack.c.0.s8 %v1624
        %v1626 = vlaneseq
        %v1627 = vshrl.u32 %v1626, 7
        %v1628 = vsub.s32 %v1625, %v1627
        %v1629 = vrot.slane %v1622, %v1628
        %v1631 = vmul.f32 %v1612, %v1629
        %v1632 = vadd.f32 %v1610, %v1631
        %s1633 = scalar_lea.vmem [#allocation10], 192
        %v1634 = vld [vmem:[%s1633] sm:$0xf]
        %1635 = vrot.lane.b32.xlu0 %v591, 77
        %v1636 = vpop.permute.xlu0 %1635
        %1637 = vrot.lane.b32.xlu0 %v592, 77
        %v1638 = vpop.permute.xlu0 %1637
        %vm1639 = vcmp.lt.s32.totalorder %v330, 77
        %v1640 = vsel %vm1639, %v1636, %v1638
        %v1641 = vsel %vm1639, %v1638, %v1636
        %v1644 = vcombine.low %v1640, %v1641
        %v1646 = vunpack.c.l.s4 1983009808
        %v1647 = vunpack.c.0.s8 %v1646
        %v1648 = vlaneseq
        %v1649 = vshrl.u32 %v1648, 7
        %v1650 = vsub.s32 %v1647, %v1649
        %v1651 = vrot.slane %v1644, %v1650
        %v1653 = vmul.f32 %v1634, %v1651
        %v1654 = vadd.f32 %v1632, %v1653
        %v1656 = vrot.slane %v1654, 7
        %v1657 = vrot.slane %v1656, 2
        %v1659 = vadd.f32 %v1654, %v1657
        %v1660 = vmul.f32 %v1659, 0.5
        %v1661 = vtanh.pop %v1660
        %v1662 = vmul.f32 %v1661, 0.5
        %v1663 = vadd.f32 %v1662, 0.5
        %v1665 = vlaneseq
        %v1666 = vshrl.u32 %v1665, 7
        %v1667 = vsub.s32 0, %v1666
        %v1668 = vrot.slane %v1663, %v1667
        %v1669 = vlaneseq
        %v1670 = vshrl.u32 %v1669, 7
        %v1671 = vsub.s32 2, %v1670
        %v1672 = vrot.slane %v1663, %v1671
        %v1675 = vlaneseq
        %v1676 = vshrl.u32 %v1675, 7
        %v1677 = vsub.s32 0, %v1676
        %v1678 = vrot.slane %v1668, %v1677
        %v1679 = vlaneseq
        %v1680 = vshrl.u32 %v1679, 7
        %v1681 = vsub.s32 0, %v1680
        %v1682 = vrot.slane %v1672, %v1681
        %v1683 = vmul.f32 %v561, %v1678
        %v1684 = vmul.f32 %v562, %v1682
        %v1685 = vld [vmem:[#allocation7] sm:$0xff]
        %1686 = vset.pattern.permute.xlu0 6
        %1687 = vperm.xlu0 %1686, %v324
        %v1688 = vpop.permute.xlu0 %1687
        %vm1690 = vcmask 64512
        %v1692 = vsel %vm1690, %v1685, 0
        %1694 = vmatprep.subr.mxu0 %v1684
        %1695 = vmatpush1.msra.mxu0 %v1683
        %1696 = vmatprep.subr.mxu0 0.0
        %1697 = vmatpush1.msra.mxu0 0.0
        %1698 = vmatprep.subr.mxu0 0.0
        %1699 = vmatpush1.msra.mxu0 0.0
        %1700 = vmatprep.subr.mxu0 0.0
        %1701 = vmatpush1.msra.mxu0 0.0
        %1702 = vmatprep.subr.mxu0 0.0
        %1703 = vmatpush1.msra.mxu0 0.0
        %1704 = vmatprep.subr.mxu0 0.0
        %1705 = vmatpush1.msra.mxu0 0.0
        %1706 = vmatprep.subr.mxu0 0.0
        %1707 = vmatpush1.msra.mxu0 0.0
        %1708 = vmatprep.subr.mxu0 0.0
        %1709 = vmatpush1.msra.mxu0 0.0
        %1710 = vmatprep.subr.mxu0 0.0
        %1711 = vmatpush1.msra.mxu0 0.0
        %1712 = vmatprep.subr.mxu0 0.0
        %1713 = vmatpush1.msra.mxu0 0.0
        %1714 = vmatprep.subr.mxu0 0.0
        %1715 = vmatpush1.msra.mxu0 0.0
        %1716 = vmatprep.subr.mxu0 0.0
        %1717 = vmatpush1.msra.mxu0 0.0
        %1718 = vmatprep.subr.mxu0 0.0
        %1719 = vmatpush1.msra.mxu0 0.0
        %1720 = vmatprep.subr.mxu0 0.0
        %1721 = vmatpush1.msra.mxu0 0.0
        %1722 = vmatprep.subr.mxu0 0.0
        %1723 = vmatpush1.msra.mxu0 0.0
        %1724 = vmatprep.subr.mxu0 0.0
        %1725 = vmatpush1.msra.mxu0 0.0
        %1726 = vmatprep.subr.mxu0 0.0
        %1727 = vmatpush1.msra.mxu0 0.0
        %1728 = vmatprep.subr.mxu0 0.0
        %1729 = vmatpush1.msra.mxu0 0.0
        %1730 = vmatprep.subr.mxu0 0.0
        %1731 = vmatpush1.msra.mxu0 0.0
        %1732 = vmatprep.subr.mxu0 0.0
        %1733 = vmatpush1.msra.mxu0 0.0
        %1734 = vmatprep.subr.mxu0 0.0
        %1735 = vmatpush1.msra.mxu0 0.0
        %1736 = vmatprep.subr.mxu0 0.0
        %1737 = vmatpush1.msra.mxu0 0.0
        %1738 = vmatprep.subr.mxu0 0.0
        %1739 = vmatpush1.msra.mxu0 0.0
        %1740 = vmatprep.subr.mxu0 0.0
        %1741 = vmatpush1.msra.mxu0 0.0
        %1742 = vmatprep.subr.mxu0 0.0
        %1743 = vmatpush1.msra.mxu0 0.0
        %1744 = vmatprep.subr.mxu0 0.0
        %1745 = vmatpush1.msra.mxu0 0.0
        %1746 = vmatprep.subr.mxu0 0.0
        %1747 = vmatpush1.msra.mxu0 0.0
        %1748 = vmatprep.subr.mxu0 0.0
        %1749 = vmatpush1.msra.mxu0 0.0
        %1750 = vmatprep.subr.mxu0 0.0
        %1751 = vmatpush1.msra.mxu0 0.0
        %1752 = vmatprep.subr.mxu0 0.0
        %1753 = vmatpush1.msra.mxu0 0.0
        %1754 = vmatprep.subr.mxu0 0.0
        %1755 = vmatpush1.msra.mxu0 0.0
        %1756 = vmatprep.subr.mxu0 0.0
        %1757 = vmatpush1.msra.mxu0 0.0
        %1758 = vmatprep.mubr.f32.mxu0 0.0
        %1759 = vmatmul.mubr.f32.gmra.mrb[0].mxu0 %v1692
        %v1760 = vpop.f32.mrb[0].mxu0
        %v1761 = vadd.f32 %v1688, %v1760
        %v1762 = vpop.f32.mrb[0].mxu0
        %v1763 = vadd.f32 %v1688, %v1762
        %1764 = vdwg.mxu0
        %v1765 = vmul.f32 %v1761, 0.5
        %v1766 = vmul.f32 %v1763, 0.5
        %v1767 = vtanh.pop %v1765
        %v1768 = vtanh.pop %v1766
        %v1769 = vmul.f32 %v1767, 0.5
        %v1770 = vmul.f32 %v1768, 0.5
        %v1771 = vadd.f32 %v1769, 0.5
        %v1772 = vadd.f32 %v1770, 0.5
        %v1773 = vmul.f32 %v1761, %v1771
        %v1774 = vmul.f32 %v1763, %v1772
        %1775 = vst [vmem:[%s321] sm:$0xff] %v1773
        %1776 = vst [vmem:[%s321 + $0x8] sm:$0xff] %v1774
        %s1777 = sand.u32 %s164, 1
        %s1778 = scalar_lea.sflag [#allocation4], %s1777
        %s1779 = sand.u32 %s164, 1
        %s1780 = smul.addr %s1779, 16
        %s1781 = scalar_lea.vmem [#allocation11], %s1780
        // Predicated region
        $region65: #{tpu_custom_call.1} parent=43 // pred_check
          %p1782 = pneg %p174
        $region66: #{tpu_custom_call.1} parent=43 // pred_check_branch
          %1784 = sbr.rel (%p1782) target = $region68
        $region67: #{tpu_custom_call.1} parent=43 // pred_region
          %s1786 = ssub.s32 256, 256
          %1787 = vsyncadd %s1778, %s1786
          %s1788 = smul.addr %s25, 2
          %s1789 = smul.addr %s1788, 128
          %s1790 = scalar_lea.hbm %s6, %s1789
          %s1792 = sshll.u32 %s1781, 4
          %s1793 = int_to_ptr.vmem [resolvable:$true] %s1792
          %1795 = dma.vmem_to_hbm [thread:$0]  %s1793, 256, %s1790, %s1778
        $region68: #{tpu_custom_call.1} parent=43 // pred_fallthru
          _
      $region44: #{tpu_custom_call.1} parent=5 // pred_fallthru
        _
      %p1796 = scmp.le.s32.totalorder 2, %s20
      // Predicated region
      $region69: #{tpu_custom_call.1} parent=5 // pred_check
        %p1797 = pneg %p1796
      $region70: #{tpu_custom_call.1} parent=5 // pred_check_branch
        %1799 = sbr.rel (%p1797) target = $region72
      $region71: #{tpu_custom_call.1} parent=5 // pred_region
        %s1800 = ssub.s32 %s20, 2
        // Predicated region
        $region73: #{tpu_custom_call.1} parent=71 // pred_check
          %p1801 = pneg %p180
        $region74: #{tpu_custom_call.1} parent=71 // pred_check_branch
          %1803 = sbr.rel (%p1801) target = $region76
        $region75: #{tpu_custom_call.1} parent=71 // pred_region
          %s1804 = sand.u32 %s165, 1
          %s1805 = scalar_lea.sflag [#allocation4], %s1804
          %s1806 = sand.u32 %s165, 1
          %s1807 = smul.addr %s1806, 16
          %s1808 = scalar_lea.vmem [#allocation11], %s1807
          %1809 = dma.done %s1805, 256
        $region76: #{tpu_custom_call.1} parent=71 // pred_fallthru
          _
      $region72: #{tpu_custom_call.1} parent=5 // pred_fallthru
        _
    $region6: #{tpu_custom_call.1} parent=1 // loop_footer
      %s24 = sadd.s32 1, %s20
    $region7: #{tpu_custom_call.1} parent=1 // loop_footer_branch
      %19 = sbr.rel target = $region3
    $region8: #{tpu_custom_call.1} parent=1 // loop_exit
      _
    %1810 = vsyncpa [#allocation3], 1
    %s1811 = scalar_lea.sflag [#allocation3], 1
    %1812 = vsyncpa %s1811, 1
    %1813 = vsyncpa [#allocation6], 1
    %1814 = vsyncpa [#allocation9], 1
    %1815 = vsyncpa [#allocation4], 1
    %s1816 = scalar_lea.sflag [#allocation4], 1
    %1817 = vsyncpa %s1816, 1

</llo_original>
